<compile_context>
chip_gen: v7x
topology: tpu7x:2x2x1
jax: 0.10.0
libtpu: 0.0.40
codegen_flags: <defaults>
</compile_context>

<pallas_src>
import functools

import numpy as np
import jax
import jax.numpy as jnp
from jax.experimental import pallas as pl
from jax.experimental.pallas import tpu as pltpu


def _digit_kernel(x_ref, a1_ref, b1_ref, a2_ref, b2_ref, a3_ref, bf1_ref,
                  wf2_ref, bf2_ref, o_ref, *, conv_dtype):
    tb = x_ref.shape[0]
    x = x_ref[...]                                   # (tb,36,128) f32; rows>=28 / lanes>=28 are 0

    # ---- conv1 as one banded matmul; each im2row tap at a 128-aligned lane offset ----
    # xcat[b, r, ki*128 + c] = x[b, r+ki, c]
    xcat = jnp.concatenate([x[:, ki:ki + 32, :] for ki in range(5)], axis=-1)        # (tb,32,640)
    c1 = jnp.dot(xcat.reshape(tb * 32, 640).astype(conv_dtype), a1_ref[...],
                 preferred_element_type=jnp.float32) + b1_ref[...]
    c1 = c1.reshape(tb, 32, 256)     # lane = j*10 + oc; rows 0..23 valid, 24..31 finite garbage

    # ---- maxpool 2x2 + relu, kept as an uncompacted 24x256 slab ----
    rm = jnp.maximum(c1[:, 0:24, :], c1[:, 1:25, :])                   # rows: max(r, r+1)
    rmc = jnp.concatenate([rm[:, :, 10:], rm[:, :, :10]], axis=-1)     # lanes shifted by 10 (wrap tail unused)
    p1 = jnp.maximum(jnp.maximum(rm, rmc), 0.0)      # p1[b, 2p, 20q+ic] = relu(pool1[b,p,q,ic])

    # ---- conv2 as one banded matmul (dropout p=0.3 is identity in eval mode) ----
    # pcat[b, r, ki*256 + L] = p1[b, r + 2*ki, L]; valid output rows are r = 2*i2
    pcat = jnp.concatenate([p1[:, 2 * ki:2 * ki + 16, :] for ki in range(5)], axis=-1)  # (tb,16,1280)
    c2 = jnp.dot(pcat.reshape(tb * 16, 1280).astype(conv_dtype), a2_ref[...],
                 preferred_element_type=jnp.float32) + b2_ref[...]
    c2 = c2.reshape(tb, 16, 256)     # lane = j2*20 + oc2; rows 0,2,...,14 valid

    # ---- maxpool 2x2 + relu ----
    rm2 = jnp.maximum(c2[:, 0:14, :], c2[:, 2:16, :])                  # rows: max(r, r+2)
    rm2c = jnp.concatenate([rm2[:, :, 20:], rm2[:, :, :20]], axis=-1)  # lanes shifted by 20
    p2 = jnp.maximum(jnp.maximum(rm2, rm2c), 0.0)    # p2[b, 4u, 40v+oc2] = relu(pool2[b,u,v,oc2])

    # ---- flatten + fc1 as a sum of 4 small matmuls (CHW flatten folded into a3 chunks) ----
    h = bf1_ref[...]
    for u in range(4):
        h = h + jnp.dot(p2[:, 4 * u, :], a3_ref[u], preferred_element_type=jnp.float32)
    h = jnp.maximum(h, 0.0)                          # (tb,128); lanes >= 50 are exactly 0

    # ---- fc2 + log_softmax over the 10 real classes ----
    # bf2 pad lanes are -1e30, so pad logits never affect the max / sum(exp); their output
    # values (~ -1e30) are sliced away in the wrapper.
    logits = jnp.dot(h, wf2_ref[...], preferred_element_type=jnp.float32) + bf2_ref[...]
    m = jnp.max(logits, axis=-1, keepdims=True)
    z = logits - m
    lse = jnp.log(jnp.sum(jnp.exp(z), axis=-1, keepdims=True))
    o_ref[...] = (z - lse).astype(o_ref.dtype)


def _pack_params(params, conv_dtype=jnp.float32):
    """Build banded/padded weight matrices (plain JAX glue, outside the kernel)."""
    f32 = jnp.float32
    w1 = params["conv1_w"].astype(f32).reshape(-1)             # idx = oc*25 + ki*5 + kj
    w2 = params["conv2_w"].astype(f32).reshape(-1)             # idx = oc2*250 + ic*25 + ki*5 + kj

    # conv1 band: A1[ki*128 + (j+kj), j*10+oc] = w1[oc, ki, kj]
    OC, KI, KJ, J = np.meshgrid(np.arange(10), np.arange(5), np.arange(5),
                                np.arange(24), indexing="ij")
    a1 = jnp.zeros((640, 256), f32).at[
        (KI * 128 + J + KJ).ravel(), (J * 10 + OC).ravel()
    ].set(w1[(OC * 25 + KI * 5 + KJ).ravel()])
    b1 = jnp.concatenate([jnp.tile(params["conv1_b"].astype(f32), 24),
                          jnp.zeros((16,), f32)]).reshape(1, 256)

    # conv2 band: A2[ki*256 + 20*(j2+kj) + ic, j2*20+oc2] = w2[oc2, ic, ki, kj]
    OC2, IC, KI2, KJ2, J2 = np.meshgrid(np.arange(20), np.arange(10), np.arange(5),
                                        np.arange(5), np.arange(8), indexing="ij")
    a2 = jnp.zeros((1280, 256), f32).at[
        (KI2 * 256 + 20 * (J2 + KJ2) + IC).ravel(), (J2 * 20 + OC2).ravel()
    ].set(w2[(OC2 * 250 + IC * 25 + KI2 * 5 + KJ2).ravel()])
    b2 = jnp.concatenate([jnp.tile(params["conv2_b"].astype(f32), 8),
                          jnp.zeros((96,), f32)]).reshape(1, 256)

    # fc1 split into 4 per-pool-row chunks: a3[u, 40v+oc2, n] = fc1_w[n, oc2*16 + u*4 + v]
    OC3, U, V = np.meshgrid(np.arange(20), np.arange(4), np.arange(4), indexing="ij")
    fc1_wT = params["fc1_w"].astype(f32).T                      # (320, 50)
    a3 = jnp.zeros((4, 256, 50), f32).at[
        U.ravel(), (40 * V + OC3).ravel()
    ].set(fc1_wT[(OC3 * 16 + U * 4 + V).ravel()])
    a3 = jnp.pad(a3, ((0, 0), (0, 0), (0, 78)))                 # (4,256,128)
    bf1 = jnp.pad(params["fc1_b"].astype(f32), (0, 78)).reshape(1, 128)

    wf2 = jnp.pad(params["fc2_w"].astype(f32).T, ((0, 78), (0, 118)))   # (128,128)
    # Pad lanes of the fc2 bias are -1e30 so the in-kernel log_softmax ignores them.
    bf2 = jnp.concatenate([params["fc2_b"].astype(f32),
                           jnp.full((118,), -1e30, f32)]).reshape(1, 128)

    return (a1.astype(conv_dtype), b1, a2.astype(conv_dtype), b2, a3, bf1, wf2, bf2)


def digit_detector_forward(x, params, batch_tile=128, use_bf16=False,
                           vmem_limit_bytes=48 * 1024 * 1024):
    """x: (B, 1, 28, 28) float32 NCHW. Returns (B, 10) log-probs (eval mode).

    batch_tile: images per grid step.  128 keeps the live intermediates around ~25 MiB,
    which fits every generation; raise toward 256 (and vmem_limit toward 96 MiB) on
    v5e/v6e (128 MiB VMEM), keep <=128 on v7x (64 MiB VMEM) and pick it so the grid has
    >= 2 even tiles there so dimension_semantics=("parallel",) uses both TensorCores.
    use_bf16: cast the conv matmul operands to bf16 (f32 accumulation) for ~2-3x MXU
    throughput; logits then differ from f32 by ~1e-3..1e-2.
    """
    B = x.shape[0]
    assert x.shape[1:] == (1, 28, 28)
    x2 = x[:, 0, :, :].astype(jnp.float32)                      # (B, 28, 28)

    tb = int(min(batch_tile, B))
    if tb < B and tb % 8 != 0:
        tb = ((tb + 7) // 8) * 8      # keep sublane-aligned output blocks when tiling
    n_tiles = -(-B // tb)
    b_pad = n_tiles * tb
    # Pad rows 28->36 (conv1 is over-computed to 32 rows/image) and lanes 28->128 so
    # every im2row slice lands at a lane-tile-aligned offset; pads are zero (finite).
    xp = jnp.pad(x2, ((0, b_pad - B), (0, 8), (0, 100)))        # (b_pad, 36, 128)

    conv_dtype = jnp.bfloat16 if use_bf16 else jnp.float32
    a1, b1, a2, b2, a3, bf1, wf2, bf2 = _pack_params(params, conv_dtype)

    kernel = functools.partial(_digit_kernel, conv_dtype=conv_dtype)
    out = pl.pallas_call(
        kernel,
        out_shape=jax.ShapeDtypeStruct((b_pad, 128), jnp.float32),
        grid=(n_tiles,),
        in_specs=[
            pl.BlockSpec((tb, 36, 128), lambda b: (b, 0, 0)),
            # Constant-index weight blocks (DMA'd once; Buffered(1) is a v7x-only knob).
            pl.BlockSpec((640, 256), lambda b: (0, 0)),
            pl.BlockSpec((1, 256), lambda b: (0, 0)),
            pl.BlockSpec((1280, 256), lambda b: (0, 0)),
            pl.BlockSpec((1, 256), lambda b: (0, 0)),
            pl.BlockSpec((4, 256, 128), lambda b: (0, 0, 0)),
            pl.BlockSpec((1, 128), lambda b: (0, 0)),
            pl.BlockSpec((128, 128), lambda b: (0, 0)),
            pl.BlockSpec((1, 128), lambda b: (0, 0)),
        ],
        out_specs=pl.BlockSpec((tb, 128), lambda b: (b, 0)),
        compiler_params=pltpu.CompilerParams(
            dimension_semantics=("parallel",),
            vmem_limit_bytes=vmem_limit_bytes,
        ),
    )(xp, a1, b1, a2, b2, a3, bf1, wf2, bf2)
    return out[:B, :10]


def reference_forward(x, params):
    """Pure-JAX reference matching the PyTorch forward (eval mode)."""
    dn = ("NCHW", "OIHW", "NCHW")
    c1 = jax.lax.conv_general_dilated(x, params["conv1_w"], (1, 1), "VALID",
                                      dimension_numbers=dn)
    c1 = c1 + params["conv1_b"][None, :, None, None]
    p1 = jax.nn.relu(jax.lax.reduce_window(c1, -jnp.inf, jax.lax.max,
                                           (1, 1, 2, 2), (1, 1, 2, 2), "VALID"))
    c2 = jax.lax.conv_general_dilated(p1, params["conv2_w"], (1, 1), "VALID",
                                      dimension_numbers=dn)
    c2 = c2 + params["conv2_b"][None, :, None, None]
    p2 = jax.nn.relu(jax.lax.reduce_window(c2, -jnp.inf, jax.lax.max,
                                           (1, 1, 2, 2), (1, 1, 2, 2), "VALID"))
    flat = p2.reshape(x.shape[0], -1)                           # CHW flatten, 320
    h = jax.nn.relu(flat @ params["fc1_w"].T + params["fc1_b"])
    logits = h @ params["fc2_w"].T + params["fc2_b"]
    return jax.nn.log_softmax(logits, axis=1)


def init_params(key):
    ks = jax.random.split(key, 8)

    def u(k, shape, fan_in):
        bound = 1.0 / np.sqrt(fan_in)
        return jax.random.uniform(k, shape, jnp.float32, -bound, bound)

    return {
        "conv1_w": u(ks[0], (10, 1, 5, 5), 25),
        "conv1_b": u(ks[1], (10,), 25),
        "conv2_w": u(ks[2], (20, 10, 5, 5), 250),
        "conv2_b": u(ks[3], (20,), 250),
        "fc1_w": u(ks[4], (50, 320), 320),
        "fc1_b": u(ks[5], (50,), 320),
        "fc2_w": u(ks[6], (10, 50), 50),
        "fc2_b": u(ks[7], (10,), 50),
    }


if __name__ == "__main__":
    key = jax.random.PRNGKey(0)
    params = init_params(key)

    # Small test matching the module's expected input (batch=2, 1x28x28).
    x = jax.random.normal(jax.random.fold_in(key, 123), (2, 1, 28, 28), dtype=jnp.float32)
    out = jax.block_until_ready(digit_detector_forward(x, params))
    ref = reference_forward(x, params)
    np.testing.assert_allclose(np.asarray(out), np.asarray(ref), atol=1e-4, rtol=1e-4)

    # Exercise the multi-tile grid + batch-padding path (B=13, tile=8 -> 2 grid steps).
    x2 = jax.random.normal(jax.random.fold_in(key, 7), (13, 1, 28, 28), dtype=jnp.float32)
    out2 = jax.block_until_ready(digit_detector_forward(x2, params, batch_tile=8))
    ref2 = reference_forward(x2, params)
    np.testing.assert_allclose(np.asarray(out2), np.asarray(ref2), atol=1e-4, rtol=1e-4)

    # Exercise the bf16-MXU-operand perf knob (looser numerics, so only sanity-check it).
    out3 = jax.block_until_ready(digit_detector_forward(x, params, use_bf16=True))
    assert out3.shape == ref.shape and bool(jnp.all(jnp.isfinite(out3)))

    print("KERNEL_OK")
</pallas_src>

<mosaic_0001>
module attributes {stable_mosaic.version = 11 : i64} {
  func.func @_digit_kernel(%arg0: i32, %arg1: memref<2x36x128xf32, #tpu.memory_space<vmem>>, %arg2: memref<640x256xf32, #tpu.memory_space<vmem>>, %arg3: memref<1x256xf32, #tpu.memory_space<vmem>>, %arg4: memref<1280x256xf32, #tpu.memory_space<vmem>>, %arg5: memref<1x256xf32, #tpu.memory_space<vmem>>, %arg6: memref<4x256x128xf32, #tpu.memory_space<vmem>>, %arg7: memref<1x128xf32, #tpu.memory_space<vmem>>, %arg8: memref<128x128xf32, #tpu.memory_space<vmem>>, %arg9: memref<1x128xf32, #tpu.memory_space<vmem>>, %arg10: memref<2x128xf32, #tpu.memory_space<vmem>>) attributes {dimension_semantics = [#tpu.dimension_semantics<parallel>], iteration_bounds = array<i64: 1>, scalar_prefetch = 0 : i64, scratch_operands = 0 : i64, tpu.core_type = #tpu.core_type<tc>, window_params = [{transform_indices = @transform_0, window_bounds = array<i64: 2, 36, 128>}, {pipeline_mode = #tpu.pipeline_mode<synchronous>, transform_indices = @transform_1, window_bounds = array<i64: 640, 256>}, {pipeline_mode = #tpu.pipeline_mode<synchronous>, transform_indices = @transform_2, window_bounds = array<i64: 1, 256>}, {pipeline_mode = #tpu.pipeline_mode<synchronous>, transform_indices = @transform_3, window_bounds = array<i64: 1280, 256>}, {pipeline_mode = #tpu.pipeline_mode<synchronous>, transform_indices = @transform_4, window_bounds = array<i64: 1, 256>}, {pipeline_mode = #tpu.pipeline_mode<synchronous>, transform_indices = @transform_5, window_bounds = array<i64: 4, 256, 128>}, {pipeline_mode = #tpu.pipeline_mode<synchronous>, transform_indices = @transform_6, window_bounds = array<i64: 1, 128>}, {pipeline_mode = #tpu.pipeline_mode<synchronous>, transform_indices = @transform_7, window_bounds = array<i64: 128, 128>}, {pipeline_mode = #tpu.pipeline_mode<synchronous>, transform_indices = @transform_8, window_bounds = array<i64: 1, 128>}, {transform_indices = @transform_9, window_bounds = array<i64: 2, 128>}]} {
    %c0 = arith.constant 0 : index
    %c0_0 = arith.constant 0 : index
    %c0_1 = arith.constant 0 : index
    %0 = vector.load %arg1[%c0, %c0_0, %c0_1] : memref<2x36x128xf32, #tpu.memory_space<vmem>>, vector<2x36x128xf32>
    %1 = vector.extract_strided_slice %0 {offsets = [0, 0, 0], sizes = [2, 32, 128], strides = [1, 1, 1]} : vector<2x36x128xf32> to vector<2x32x128xf32>
    %2 = vector.extract_strided_slice %0 {offsets = [0, 1, 0], sizes = [2, 32, 128], strides = [1, 1, 1]} : vector<2x36x128xf32> to vector<2x32x128xf32>
    %3 = vector.extract_strided_slice %0 {offsets = [0, 2, 0], sizes = [2, 32, 128], strides = [1, 1, 1]} : vector<2x36x128xf32> to vector<2x32x128xf32>
    %4 = vector.extract_strided_slice %0 {offsets = [0, 3, 0], sizes = [2, 32, 128], strides = [1, 1, 1]} : vector<2x36x128xf32> to vector<2x32x128xf32>
    %5 = vector.extract_strided_slice %0 {offsets = [0, 4, 0], sizes = [2, 32, 128], strides = [1, 1, 1]} : vector<2x36x128xf32> to vector<2x32x128xf32>
    %6 = tpu.concatenate %1, %2, %3, %4, %5 in 2 : vector<2x32x128xf32>, vector<2x32x128xf32>, vector<2x32x128xf32>, vector<2x32x128xf32>, vector<2x32x128xf32> -> vector<2x32x640xf32>
    %7 = vector.shape_cast %6 : vector<2x32x640xf32> to vector<64x640xf32>
    %c0_2 = arith.constant 0 : index
    %c0_3 = arith.constant 0 : index
    %8 = vector.load %arg2[%c0_2, %c0_3] : memref<640x256xf32, #tpu.memory_space<vmem>>, vector<640x256xf32>
    %cst = arith.constant dense<0.000000e+00> : vector<64x256xf32>
    %9 = tpu.matmul %7, %8, %cst {dimension_numbers = #tpu.dot_dimension_numbers<[1], [0], [0], [1], [0, 0, 1, 1], [], []>} : vector<64x640xf32>, vector<640x256xf32>, vector<64x256xf32> -> vector<64x256xf32>
    %c0_4 = arith.constant 0 : index
    %c0_5 = arith.constant 0 : index
    %10 = vector.load %arg3[%c0_4, %c0_5] : memref<1x256xf32, #tpu.memory_space<vmem>>, vector<1x256xf32>
    %11 = vector.broadcast %10 : vector<1x256xf32> to vector<64x256xf32>
    %12 = arith.addf %9, %11 : vector<64x256xf32>
    %13 = vector.shape_cast %12 : vector<64x256xf32> to vector<2x32x256xf32>
    %14 = vector.extract_strided_slice %13 {offsets = [0, 0, 0], sizes = [2, 24, 256], strides = [1, 1, 1]} : vector<2x32x256xf32> to vector<2x24x256xf32>
    %15 = vector.extract_strided_slice %13 {offsets = [0, 1, 0], sizes = [2, 24, 256], strides = [1, 1, 1]} : vector<2x32x256xf32> to vector<2x24x256xf32>
    %16 = arith.maximumf %14, %15 : vector<2x24x256xf32>
    %17 = vector.extract_strided_slice %16 {offsets = [0, 0, 10], sizes = [2, 24, 246], strides = [1, 1, 1]} : vector<2x24x256xf32> to vector<2x24x246xf32>
    %18 = vector.extract_strided_slice %16 {offsets = [0, 0, 0], sizes = [2, 24, 10], strides = [1, 1, 1]} : vector<2x24x256xf32> to vector<2x24x10xf32>
    %19 = tpu.concatenate %17, %18 in 2 : vector<2x24x246xf32>, vector<2x24x10xf32> -> vector<2x24x256xf32>
    %20 = arith.maximumf %16, %19 : vector<2x24x256xf32>
    %cst_6 = arith.constant 0.000000e+00 : f32
    %21 = vector.broadcast %cst_6 : f32 to vector<2x24x256xf32>
    %22 = arith.maximumf %20, %21 : vector<2x24x256xf32>
    %23 = vector.extract_strided_slice %22 {offsets = [0, 0, 0], sizes = [2, 16, 256], strides = [1, 1, 1]} : vector<2x24x256xf32> to vector<2x16x256xf32>
    %24 = vector.extract_strided_slice %22 {offsets = [0, 2, 0], sizes = [2, 16, 256], strides = [1, 1, 1]} : vector<2x24x256xf32> to vector<2x16x256xf32>
    %25 = vector.extract_strided_slice %22 {offsets = [0, 4, 0], sizes = [2, 16, 256], strides = [1, 1, 1]} : vector<2x24x256xf32> to vector<2x16x256xf32>
    %26 = vector.extract_strided_slice %22 {offsets = [0, 6, 0], sizes = [2, 16, 256], strides = [1, 1, 1]} : vector<2x24x256xf32> to vector<2x16x256xf32>
    %27 = vector.extract_strided_slice %22 {offsets = [0, 8, 0], sizes = [2, 16, 256], strides = [1, 1, 1]} : vector<2x24x256xf32> to vector<2x16x256xf32>
    %28 = tpu.concatenate %23, %24, %25, %26, %27 in 2 : vector<2x16x256xf32>, vector<2x16x256xf32>, vector<2x16x256xf32>, vector<2x16x256xf32>, vector<2x16x256xf32> -> vector<2x16x1280xf32>
    %29 = vector.shape_cast %28 : vector<2x16x1280xf32> to vector<32x1280xf32>
    %c0_7 = arith.constant 0 : index
    %c0_8 = arith.constant 0 : index
    %30 = vector.load %arg4[%c0_7, %c0_8] : memref<1280x256xf32, #tpu.memory_space<vmem>>, vector<1280x256xf32>
    %cst_9 = arith.constant dense<0.000000e+00> : vector<32x256xf32>
    %31 = tpu.matmul %29, %30, %cst_9 {dimension_numbers = #tpu.dot_dimension_numbers<[1], [0], [0], [1], [0, 0, 1, 1], [], []>} : vector<32x1280xf32>, vector<1280x256xf32>, vector<32x256xf32> -> vector<32x256xf32>
    %c0_10 = arith.constant 0 : index
    %c0_11 = arith.constant 0 : index
    %32 = vector.load %arg5[%c0_10, %c0_11] : memref<1x256xf32, #tpu.memory_space<vmem>>, vector<1x256xf32>
    %33 = vector.broadcast %32 : vector<1x256xf32> to vector<32x256xf32>
    %34 = arith.addf %31, %33 : vector<32x256xf32>
    %35 = vector.shape_cast %34 : vector<32x256xf32> to vector<2x16x256xf32>
    %36 = vector.extract_strided_slice %35 {offsets = [0, 0, 0], sizes = [2, 14, 256], strides = [1, 1, 1]} : vector<2x16x256xf32> to vector<2x14x256xf32>
    %37 = vector.extract_strided_slice %35 {offsets = [0, 2, 0], sizes = [2, 14, 256], strides = [1, 1, 1]} : vector<2x16x256xf32> to vector<2x14x256xf32>
    %38 = arith.maximumf %36, %37 : vector<2x14x256xf32>
    %39 = vector.extract_strided_slice %38 {offsets = [0, 0, 20], sizes = [2, 14, 236], strides = [1, 1, 1]} : vector<2x14x256xf32> to vector<2x14x236xf32>
    %40 = vector.extract_strided_slice %38 {offsets = [0, 0, 0], sizes = [2, 14, 20], strides = [1, 1, 1]} : vector<2x14x256xf32> to vector<2x14x20xf32>
    %41 = tpu.concatenate %39, %40 in 2 : vector<2x14x236xf32>, vector<2x14x20xf32> -> vector<2x14x256xf32>
    %42 = arith.maximumf %38, %41 : vector<2x14x256xf32>
    %cst_12 = arith.constant 0.000000e+00 : f32
    %43 = vector.broadcast %cst_12 : f32 to vector<2x14x256xf32>
    %44 = arith.maximumf %42, %43 : vector<2x14x256xf32>
    %c0_13 = arith.constant 0 : index
    %c0_14 = arith.constant 0 : index
    %45 = vector.load %arg7[%c0_13, %c0_14] : memref<1x128xf32, #tpu.memory_space<vmem>>, vector<1x128xf32>
    %46 = vector.extract_strided_slice %44 {offsets = [0, 0, 0], sizes = [2, 1, 256], strides = [1, 1, 1]} : vector<2x14x256xf32> to vector<2x1x256xf32>
    %47 = vector.shape_cast %46 : vector<2x1x256xf32> to vector<2x256xf32>
    %c0_15 = arith.constant 0 : index
    %c0_16 = arith.constant 0 : index
    %c0_17 = arith.constant 0 : index
    %48 = vector.load %arg6[%c0_15, %c0_16, %c0_17] : memref<4x256x128xf32, #tpu.memory_space<vmem>>, vector<1x256x128xf32>
    %49 = vector.shape_cast %48 : vector<1x256x128xf32> to vector<256x128xf32>
    %cst_18 = arith.constant dense<0.000000e+00> : vector<2x128xf32>
    %50 = tpu.matmul %47, %49, %cst_18 {dimension_numbers = #tpu.dot_dimension_numbers<[1], [0], [0], [1], [0, 0, 1, 1], [], []>} : vector<2x256xf32>, vector<256x128xf32>, vector<2x128xf32> -> vector<2x128xf32>
    %51 = vector.broadcast %45 : vector<1x128xf32> to vector<2x128xf32>
    %52 = arith.addf %51, %50 : vector<2x128xf32>
    %53 = vector.extract_strided_slice %44 {offsets = [0, 4, 0], sizes = [2, 1, 256], strides = [1, 1, 1]} : vector<2x14x256xf32> to vector<2x1x256xf32>
    %54 = vector.shape_cast %53 : vector<2x1x256xf32> to vector<2x256xf32>
    %c1 = arith.constant 1 : index
    %c0_19 = arith.constant 0 : index
    %c0_20 = arith.constant 0 : index
    %55 = vector.load %arg6[%c1, %c0_19, %c0_20] : memref<4x256x128xf32, #tpu.memory_space<vmem>>, vector<1x256x128xf32>
    %56 = vector.shape_cast %55 : vector<1x256x128xf32> to vector<256x128xf32>
    %cst_21 = arith.constant dense<0.000000e+00> : vector<2x128xf32>
    %57 = tpu.matmul %54, %56, %cst_21 {dimension_numbers = #tpu.dot_dimension_numbers<[1], [0], [0], [1], [0, 0, 1, 1], [], []>} : vector<2x256xf32>, vector<256x128xf32>, vector<2x128xf32> -> vector<2x128xf32>
    %58 = arith.addf %52, %57 : vector<2x128xf32>
    %59 = vector.extract_strided_slice %44 {offsets = [0, 8, 0], sizes = [2, 1, 256], strides = [1, 1, 1]} : vector<2x14x256xf32> to vector<2x1x256xf32>
    %60 = vector.shape_cast %59 : vector<2x1x256xf32> to vector<2x256xf32>
    %c2 = arith.constant 2 : index
    %c0_22 = arith.constant 0 : index
    %c0_23 = arith.constant 0 : index
    %61 = vector.load %arg6[%c2, %c0_22, %c0_23] : memref<4x256x128xf32, #tpu.memory_space<vmem>>, vector<1x256x128xf32>
    %62 = vector.shape_cast %61 : vector<1x256x128xf32> to vector<256x128xf32>
    %cst_24 = arith.constant dense<0.000000e+00> : vector<2x128xf32>
    %63 = tpu.matmul %60, %62, %cst_24 {dimension_numbers = #tpu.dot_dimension_numbers<[1], [0], [0], [1], [0, 0, 1, 1], [], []>} : vector<2x256xf32>, vector<256x128xf32>, vector<2x128xf32> -> vector<2x128xf32>
    %64 = arith.addf %58, %63 : vector<2x128xf32>
    %65 = vector.extract_strided_slice %44 {offsets = [0, 12, 0], sizes = [2, 1, 256], strides = [1, 1, 1]} : vector<2x14x256xf32> to vector<2x1x256xf32>
    %66 = vector.shape_cast %65 : vector<2x1x256xf32> to vector<2x256xf32>
    %c3 = arith.constant 3 : index
    %c0_25 = arith.constant 0 : index
    %c0_26 = arith.constant 0 : index
    %67 = vector.load %arg6[%c3, %c0_25, %c0_26] : memref<4x256x128xf32, #tpu.memory_space<vmem>>, vector<1x256x128xf32>
    %68 = vector.shape_cast %67 : vector<1x256x128xf32> to vector<256x128xf32>
    %cst_27 = arith.constant dense<0.000000e+00> : vector<2x128xf32>
    %69 = tpu.matmul %66, %68, %cst_27 {dimension_numbers = #tpu.dot_dimension_numbers<[1], [0], [0], [1], [0, 0, 1, 1], [], []>} : vector<2x256xf32>, vector<256x128xf32>, vector<2x128xf32> -> vector<2x128xf32>
    %70 = arith.addf %64, %69 : vector<2x128xf32>
    %cst_28 = arith.constant 0.000000e+00 : f32
    %71 = vector.broadcast %cst_28 : f32 to vector<2x128xf32>
    %72 = arith.maximumf %70, %71 : vector<2x128xf32>
    %c0_29 = arith.constant 0 : index
    %c0_30 = arith.constant 0 : index
    %73 = vector.load %arg8[%c0_29, %c0_30] : memref<128x128xf32, #tpu.memory_space<vmem>>, vector<128x128xf32>
    %cst_31 = arith.constant dense<0.000000e+00> : vector<2x128xf32>
    %74 = tpu.matmul %72, %73, %cst_31 {dimension_numbers = #tpu.dot_dimension_numbers<[1], [0], [0], [1], [0, 0, 1, 1], [], []>} : vector<2x128xf32>, vector<128x128xf32>, vector<2x128xf32> -> vector<2x128xf32>
    %c0_32 = arith.constant 0 : index
    %c0_33 = arith.constant 0 : index
    %75 = vector.load %arg9[%c0_32, %c0_33] : memref<1x128xf32, #tpu.memory_space<vmem>>, vector<1x128xf32>
    %76 = vector.broadcast %75 : vector<1x128xf32> to vector<2x128xf32>
    %77 = arith.addf %74, %76 : vector<2x128xf32>
    %cst_34 = arith.constant dense<0xFF800000> : vector<2xf32>
    %78 = vector.multi_reduction <maximumf>, %77, %cst_34 [1] : vector<2x128xf32> to vector<2xf32>
    %79 = vector.shape_cast %78 : vector<2xf32> to vector<2x1xf32>
    %80 = vector.broadcast %79 : vector<2x1xf32> to vector<2x128xf32>
    %81 = arith.subf %77, %80 : vector<2x128xf32>
    %82 = math.exp %81 : vector<2x128xf32>
    %cst_35 = arith.constant dense<0.000000e+00> : vector<2xf32>
    %83 = vector.multi_reduction <add>, %82, %cst_35 [1] : vector<2x128xf32> to vector<2xf32>
    %84 = vector.shape_cast %83 : vector<2xf32> to vector<2x1xf32>
    %85 = math.log %84 : vector<2x1xf32>
    %86 = vector.broadcast %85 : vector<2x1xf32> to vector<2x128xf32>
    %87 = arith.subf %81, %86 : vector<2x128xf32>
    %c0_36 = arith.constant 0 : index
    %c0_37 = arith.constant 0 : index
    %88 = vector.load %arg10[%c0_36, %c0_37] : memref<2x128xf32, #tpu.memory_space<vmem>>, vector<2x128xf32>
    tpu.vector_store %arg10[%c0_36, %c0_37], %87 {strides = array<i32>} : memref<2x128xf32, #tpu.memory_space<vmem>>, vector<2x128xf32>,
    return
  }
  func.func @transform_0(%arg0: i32) -> (i32, i32, i32) {
    %c0_i32 = arith.constant 0 : i32
    %c0_i32_0 = arith.constant 0 : i32
    %c0_i32_1 = arith.constant 0 : i32
    return %arg0, %c0_i32, %c0_i32_0 : i32, i32, i32
  }
  func.func @transform_1(%arg0: i32) -> (i32, i32) {
    %c0_i32 = arith.constant 0 : i32
    %c0_i32_0 = arith.constant 0 : i32
    %c0_i32_1 = arith.constant 0 : i32
    return %c0_i32, %c0_i32_0 : i32, i32
  }
  func.func @transform_2(%arg0: i32) -> (i32, i32) {
    %c0_i32 = arith.constant 0 : i32
    %c0_i32_0 = arith.constant 0 : i32
    %c0_i32_1 = arith.constant 0 : i32
    return %c0_i32, %c0_i32_0 : i32, i32
  }
  func.func @transform_3(%arg0: i32) -> (i32, i32) {
    %c0_i32 = arith.constant 0 : i32
    %c0_i32_0 = arith.constant 0 : i32
    %c0_i32_1 = arith.constant 0 : i32
    return %c0_i32, %c0_i32_0 : i32, i32
  }
  func.func @transform_4(%arg0: i32) -> (i32, i32) {
    %c0_i32 = arith.constant 0 : i32
    %c0_i32_0 = arith.constant 0 : i32
    %c0_i32_1 = arith.constant 0 : i32
    return %c0_i32, %c0_i32_0 : i32, i32
  }
  func.func @transform_5(%arg0: i32) -> (i32, i32, i32) {
    %c0_i32 = arith.constant 0 : i32
    %c0_i32_0 = arith.constant 0 : i32
    %c0_i32_1 = arith.constant 0 : i32
    %c0_i32_2 = arith.constant 0 : i32
    return %c0_i32, %c0_i32_0, %c0_i32_1 : i32, i32, i32
  }
  func.func @transform_6(%arg0: i32) -> (i32, i32) {
    %c0_i32 = arith.constant 0 : i32
    %c0_i32_0 = arith.constant 0 : i32
    %c0_i32_1 = arith.constant 0 : i32
    return %c0_i32, %c0_i32_0 : i32, i32
  }
  func.func @transform_7(%arg0: i32) -> (i32, i32) {
    %c0_i32 = arith.constant 0 : i32
    %c0_i32_0 = arith.constant 0 : i32
    %c0_i32_1 = arith.constant 0 : i32
    return %c0_i32, %c0_i32_0 : i32, i32
  }
  func.func @transform_8(%arg0: i32) -> (i32, i32) {
    %c0_i32 = arith.constant 0 : i32
    %c0_i32_0 = arith.constant 0 : i32
    %c0_i32_1 = arith.constant 0 : i32
    return %c0_i32, %c0_i32_0 : i32, i32
  }
  func.func @transform_9(%arg0: i32) -> (i32, i32) {
    %c0_i32 = arith.constant 0 : i32
    %c0_i32_0 = arith.constant 0 : i32
    return %arg0, %c0_i32 : i32, i32
  }
}

</mosaic_0001>

<llo_original>
// kernel: tpu_custom_call.1
$region0: #{tpu_custom_call.1}
  #allocation0 [shape = 'u32[]', space=smem, size = 0x4, offset = 0x4, fixed_abs, tag = 'smem constant byte address 0x4 - core index']
  #allocation1 [shape = 'u32[144,128]{1,0:T(1,128)}', space=vmem, size = 0x12000, scoped, tag = 'internal scratch']
  %s0 = inlined_call_operand.vmem [shape: f32[2,36,128], index: 0, kind: input, shape index: {}]
  %s1 = inlined_call_operand.hbm [shape: f32[640,256], index: 1, kind: input, shape index: {}]
  %s2 = inlined_call_operand.hbm [shape: f32[1,256], index: 2, kind: input, shape index: {}]
  %s3 = inlined_call_operand.hbm [shape: f32[1280,256], index: 3, kind: input, shape index: {}]
  %s4 = inlined_call_operand.hbm [shape: f32[1,256], index: 4, kind: input, shape index: {}]
  %s5 = inlined_call_operand.hbm [shape: f32[4,256,128], index: 5, kind: input, shape index: {}]
  %s6 = inlined_call_operand.hbm [shape: f32[1,128], index: 6, kind: input, shape index: {}]
  %s7 = inlined_call_operand.hbm [shape: f32[128,128], index: 7, kind: input, shape index: {}]
  %s8 = inlined_call_operand.hbm [shape: f32[1,128], index: 8, kind: input, shape index: {}]
  %s9 = inlined_call_operand.hbm [shape: f32[2,128], index: 9, kind: output, shape index: {}]
  %s10 = sld [smem:[#allocation0]]
  $region78: #{tpu_custom_call.1} parent=0
    _
  %s12 = ssub.s32 1, %s10
  %s13 = scalar_select 0, %s12, %s10
  $region1: #{tpu_custom_call.1} parent=0
    #allocation2 [shape = 'u8[655360]{0}', space=vmem, size = 0xa0000, scoped, tag = 'input window, operand 1, single buffered']
    #allocation3 [shape = 's32[1]{0}', space=sflag, size = 0x4, scoped, tag = 'scoped memory for tpu_custom_call.1']
    #allocation4 [shape = 's32[1]{0}', space=sflag, size = 0x4, scoped, tag = 'scoped memory for tpu_custom_call.1']
    #allocation5 [shape = 'u8[1024]{0}', space=vmem, size = 0x400, scoped, tag = 'input window, operand 2, single buffered']
    #allocation6 [shape = 's32[1]{0}', space=sflag, size = 0x4, scoped, tag = 'scoped memory for tpu_custom_call.1']
    #allocation7 [shape = 'u8[1310720]{0}', space=vmem, size = 0x140000, scoped, tag = 'input window, operand 3, single buffered']
    #allocation8 [shape = 'u8[1024]{0}', space=vmem, size = 0x400, scoped, tag = 'input window, operand 4, single buffered']
    #allocation9 [shape = 's32[1]{0}', space=sflag, size = 0x4, scoped, tag = 'scoped memory for tpu_custom_call.1']
    #allocation10 [shape = 'u8[524288]{0}', space=vmem, size = 0x80000, scoped, tag = 'input window, operand 5, single buffered']
    #allocation11 [shape = 'u8[512]{0}', space=vmem, size = 0x400, scoped, tag = 'input window, operand 6, single buffered']
    #allocation12 [shape = 's32[1]{0}', space=sflag, size = 0x4, scoped, tag = 'scoped memory for tpu_custom_call.1']
    #allocation13 [shape = 'u8[65536]{0}', space=vmem, size = 0x10000, scoped, tag = 'input window, operand 7, single buffered']
    #allocation14 [shape = 'u8[512]{0}', space=vmem, size = 0x400, scoped, tag = 'input window, operand 8, single buffered']
    #allocation15 [shape = 's32[1]{0}', space=sflag, size = 0x4, scoped, tag = 'scoped memory for tpu_custom_call.1']
    #allocation16 [shape = 'u8[1024]{0}', space=vmem, size = 0x400, scoped, tag = 'output window, operand 0, single buffered']
    %14 = vsyncpa [#allocation3], 0
    %15 = vsyncpa [#allocation6], 0
    %16 = vsyncpa [#allocation9], 0
    %17 = vsyncpa [#allocation12], 0
    %18 = vsyncpa [#allocation15], 0
    %19 = vsyncpa [#allocation4], 0
    // Predicated region
    $region2: #{tpu_custom_call.1} parent=1 // pred_check
      _
    $region3: #{tpu_custom_call.1} parent=1 // pred_check_branch
      %21 = sbr.rel (0) target = $region5
    $region4: #{tpu_custom_call.1} parent=1 // pred_region
      _
    $region5: #{tpu_custom_call.1} parent=1 // pred_fallthru
      _
    // Predicated region
    $region6: #{tpu_custom_call.1} parent=1 // pred_check
      _
    $region7: #{tpu_custom_call.1} parent=1 // pred_check_branch
      %23 = sbr.rel (0) target = $region9
    $region8: #{tpu_custom_call.1} parent=1 // pred_region
      %s25 = ssub.s32 20480, 20480
      %26 = vsyncadd [#allocation3], %s25
      %s27 = sshll.u32 [#allocation2], 4
      %s28 = int_to_ptr.vmem [resolvable:$true] %s27
      %33 = dma.hbm_to_vmem [thread:$0]  %s1, 20480, %s28, [#allocation3], 256, 256, 16
    $region9: #{tpu_custom_call.1} parent=1 // pred_fallthru
      _
    // Predicated region
    $region10: #{tpu_custom_call.1} parent=1 // pred_check
      _
    $region11: #{tpu_custom_call.1} parent=1 // pred_check_branch
      %35 = sbr.rel (0) target = $region13
    $region12: #{tpu_custom_call.1} parent=1 // pred_region
      %s37 = ssub.s32 32, 32
      %38 = vsyncadd [#allocation6], %s37
      %s40 = sshll.u32 [#allocation5], 4
      %s41 = int_to_ptr.vmem [resolvable:$true] %s40
      %43 = dma.hbm_to_vmem [thread:$0]  %s2, 32, %s41, [#allocation6]
    $region13: #{tpu_custom_call.1} parent=1 // pred_fallthru
      _
    // Predicated region
    $region14: #{tpu_custom_call.1} parent=1 // pred_check
      _
    $region15: #{tpu_custom_call.1} parent=1 // pred_check_branch
      %45 = sbr.rel (0) target = $region17
    $region16: #{tpu_custom_call.1} parent=1 // pred_region
      %s47 = ssub.s32 40960, 40960
      %48 = vsyncadd [#allocation6], %s47
      %s49 = sshll.u32 [#allocation7], 4
      %s50 = int_to_ptr.vmem [resolvable:$true] %s49
      %55 = dma.hbm_to_vmem [thread:$0]  %s3, 40960, %s50, [#allocation6], 256, 256, 16
    $region17: #{tpu_custom_call.1} parent=1 // pred_fallthru
      _
    // Predicated region
    $region18: #{tpu_custom_call.1} parent=1 // pred_check
      _
    $region19: #{tpu_custom_call.1} parent=1 // pred_check_branch
      %57 = sbr.rel (0) target = $region21
    $region20: #{tpu_custom_call.1} parent=1 // pred_region
      %s59 = ssub.s32 32, 32
      %60 = vsyncadd [#allocation9], %s59
      %s62 = sshll.u32 [#allocation8], 4
      %s63 = int_to_ptr.vmem [resolvable:$true] %s62
      %65 = dma.hbm_to_vmem [thread:$0]  %s4, 32, %s63, [#allocation9]
    $region21: #{tpu_custom_call.1} parent=1 // pred_fallthru
      _
    // Predicated region
    $region22: #{tpu_custom_call.1} parent=1 // pred_check
      _
    $region23: #{tpu_custom_call.1} parent=1 // pred_check_branch
      %67 = sbr.rel (0) target = $region25
    $region24: #{tpu_custom_call.1} parent=1 // pred_region
      %s69 = ssub.s32 16384, 16384
      %70 = vsyncadd [#allocation9], %s69
      %s71 = sshll.u32 [#allocation10], 4
      %s72 = int_to_ptr.vmem [resolvable:$true] %s71
      %77 = dma.hbm_to_vmem [thread:$0]  %s5, 16384, %s72, [#allocation9], 128, 128, 8
    $region25: #{tpu_custom_call.1} parent=1 // pred_fallthru
      _
    // Predicated region
    $region26: #{tpu_custom_call.1} parent=1 // pred_check
      _
    $region27: #{tpu_custom_call.1} parent=1 // pred_check_branch
      %79 = sbr.rel (0) target = $region29
    $region28: #{tpu_custom_call.1} parent=1 // pred_region
      %s81 = ssub.s32 16, 16
      %82 = vsyncadd [#allocation12], %s81
      %s84 = sshll.u32 [#allocation11], 4
      %s85 = int_to_ptr.vmem [resolvable:$true] %s84
      %87 = dma.hbm_to_vmem [thread:$0]  %s6, 16, %s85, [#allocation12]
    $region29: #{tpu_custom_call.1} parent=1 // pred_fallthru
      _
    // Predicated region
    $region30: #{tpu_custom_call.1} parent=1 // pred_check
      _
    $region31: #{tpu_custom_call.1} parent=1 // pred_check_branch
      %89 = sbr.rel (0) target = $region33
    $region32: #{tpu_custom_call.1} parent=1 // pred_region
      %s91 = ssub.s32 2048, 2048
      %92 = vsyncadd [#allocation12], %s91
      %s93 = sshll.u32 [#allocation13], 4
      %s94 = int_to_ptr.vmem [resolvable:$true] %s93
      %99 = dma.hbm_to_vmem [thread:$0]  %s7, 2048, %s94, [#allocation12], 128, 128, 8
    $region33: #{tpu_custom_call.1} parent=1 // pred_fallthru
      _
    // Predicated region
    $region34: #{tpu_custom_call.1} parent=1 // pred_check
      _
    $region35: #{tpu_custom_call.1} parent=1 // pred_check_branch
      %101 = sbr.rel (0) target = $region37
    $region36: #{tpu_custom_call.1} parent=1 // pred_region
      %s103 = ssub.s32 16, 16
      %104 = vsyncadd [#allocation15], %s103
      %s106 = sshll.u32 [#allocation14], 4
      %s107 = int_to_ptr.vmem [resolvable:$true] %s106
      %109 = dma.hbm_to_vmem [thread:$0]  %s8, 16, %s107, [#allocation15]
    $region37: #{tpu_custom_call.1} parent=1 // pred_fallthru
      _
    // Predicated region
    $region38: #{tpu_custom_call.1} parent=1 // pred_check
      _
    $region39: #{tpu_custom_call.1} parent=1 // pred_check_branch
      %111 = sbr.rel (0) target = $region41
    $region40: #{tpu_custom_call.1} parent=1 // pred_region
      %112 = dma.done [#allocation3], 20480
    $region41: #{tpu_custom_call.1} parent=1 // pred_fallthru
      _
    // Predicated region
    $region42: #{tpu_custom_call.1} parent=1 // pred_check
      _
    $region43: #{tpu_custom_call.1} parent=1 // pred_check_branch
      %114 = sbr.rel (0) target = $region45
    $region44: #{tpu_custom_call.1} parent=1 // pred_region
      %115 = dma.done [#allocation6], 32
    $region45: #{tpu_custom_call.1} parent=1 // pred_fallthru
      _
    // Predicated region
    $region46: #{tpu_custom_call.1} parent=1 // pred_check
      _
    $region47: #{tpu_custom_call.1} parent=1 // pred_check_branch
      %117 = sbr.rel (0) target = $region49
    $region48: #{tpu_custom_call.1} parent=1 // pred_region
      %118 = dma.done [#allocation6], 40960
    $region49: #{tpu_custom_call.1} parent=1 // pred_fallthru
      _
    // Predicated region
    $region50: #{tpu_custom_call.1} parent=1 // pred_check
      _
    $region51: #{tpu_custom_call.1} parent=1 // pred_check_branch
      %120 = sbr.rel (0) target = $region53
    $region52: #{tpu_custom_call.1} parent=1 // pred_region
      %121 = dma.done [#allocation9], 32
    $region53: #{tpu_custom_call.1} parent=1 // pred_fallthru
      _
    // Predicated region
    $region54: #{tpu_custom_call.1} parent=1 // pred_check
      _
    $region55: #{tpu_custom_call.1} parent=1 // pred_check_branch
      %123 = sbr.rel (0) target = $region57
    $region56: #{tpu_custom_call.1} parent=1 // pred_region
      %124 = dma.done [#allocation9], 16384
    $region57: #{tpu_custom_call.1} parent=1 // pred_fallthru
      _
    // Predicated region
    $region58: #{tpu_custom_call.1} parent=1 // pred_check
      _
    $region59: #{tpu_custom_call.1} parent=1 // pred_check_branch
      %126 = sbr.rel (0) target = $region61
    $region60: #{tpu_custom_call.1} parent=1 // pred_region
      %127 = dma.done [#allocation12], 16
    $region61: #{tpu_custom_call.1} parent=1 // pred_fallthru
      _
    // Predicated region
    $region62: #{tpu_custom_call.1} parent=1 // pred_check
      _
    $region63: #{tpu_custom_call.1} parent=1 // pred_check_branch
      %129 = sbr.rel (0) target = $region65
    $region64: #{tpu_custom_call.1} parent=1 // pred_region
      %130 = dma.done [#allocation12], 2048
    $region65: #{tpu_custom_call.1} parent=1 // pred_fallthru
      _
    // Predicated region
    $region66: #{tpu_custom_call.1} parent=1 // pred_check
      _
    $region67: #{tpu_custom_call.1} parent=1 // pred_check_branch
      %132 = sbr.rel (0) target = $region69
    $region68: #{tpu_custom_call.1} parent=1 // pred_region
      %133 = dma.done [#allocation15], 16
    $region69: #{tpu_custom_call.1} parent=1 // pred_fallthru
      _
    %v134 = vld [vmem:[%s0] sm:$0xff]
    %v135 = vld [vmem:[%s0 + $0x8] sm:$0xff]
    %v136 = vld [vmem:[%s0 + $0x10] sm:$0xff]
    %v137 = vld [vmem:[%s0 + $0x18] sm:$0xff]
    %v138 = vld [vmem:[%s0 + $0x20] sm:$0xf]
    %v139 = vld [vmem:[%s0 + $0x28] sm:$0xff]
    %v140 = vld [vmem:[%s0 + $0x30] sm:$0xff]
    %v141 = vld [vmem:[%s0 + $0x38] sm:$0xff]
    %v142 = vld [vmem:[%s0 + $0x40] sm:$0xff]
    %v143 = vld [vmem:[%s0 + $0x48] sm:$0xf]
    %vm154 = vcmask 1046528
    %v155 = vrot.slane %v134, 1
    %v156 = vrot.slane %v135, 1
    %v157 = vsel %vm154, %v155, %v156
    %v158 = vrot.slane %v136, 1
    %v159 = vsel %vm154, %v156, %v158
    %v160 = vrot.slane %v137, 1
    %v161 = vsel %vm154, %v158, %v160
    %v162 = vrot.slane %v138, 1
    %v163 = vsel %vm154, %v160, %v162
    %v164 = vrot.slane %v139, 1
    %v165 = vrot.slane %v140, 1
    %v166 = vsel %vm154, %v164, %v165
    %v167 = vrot.slane %v141, 1
    %v168 = vsel %vm154, %v165, %v167
    %v169 = vrot.slane %v142, 1
    %v170 = vsel %vm154, %v167, %v169
    %v171 = vrot.slane %v143, 1
    %v172 = vsel %vm154, %v169, %v171
    %vm181 = vcmask 1045504
    %v182 = vrot.slane %v134, 2
    %v183 = vrot.slane %v135, 2
    %v184 = vsel %vm181, %v182, %v183
    %v185 = vrot.slane %v136, 2
    %v186 = vsel %vm181, %v183, %v185
    %v187 = vrot.slane %v137, 2
    %v188 = vsel %vm181, %v185, %v187
    %v189 = vrot.slane %v138, 2
    %v190 = vsel %vm181, %v187, %v189
    %v191 = vrot.slane %v139, 2
    %v192 = vrot.slane %v140, 2
    %v193 = vsel %vm181, %v191, %v192
    %v194 = vrot.slane %v141, 2
    %v195 = vsel %vm181, %v192, %v194
    %v196 = vrot.slane %v142, 2
    %v197 = vsel %vm181, %v194, %v196
    %v198 = vrot.slane %v143, 2
    %v199 = vsel %vm181, %v196, %v198
    %vm208 = vcmask 1044480
    %v209 = vrot.slane %v134, 3
    %v210 = vrot.slane %v135, 3
    %v211 = vsel %vm208, %v209, %v210
    %v212 = vrot.slane %v136, 3
    %v213 = vsel %vm208, %v210, %v212
    %v214 = vrot.slane %v137, 3
    %v215 = vsel %vm208, %v212, %v214
    %v216 = vrot.slane %v138, 3
    %v217 = vsel %vm208, %v214, %v216
    %v218 = vrot.slane %v139, 3
    %v219 = vrot.slane %v140, 3
    %v220 = vsel %vm208, %v218, %v219
    %v221 = vrot.slane %v141, 3
    %v222 = vsel %vm208, %v219, %v221
    %v223 = vrot.slane %v142, 3
    %v224 = vsel %vm208, %v221, %v223
    %v225 = vrot.slane %v143, 3
    %v226 = vsel %vm208, %v223, %v225
    %vm235 = vcmask 1043456
    %v236 = vrot.slane %v134, 4
    %v237 = vrot.slane %v135, 4
    %v238 = vsel %vm235, %v236, %v237
    %v239 = vrot.slane %v136, 4
    %v240 = vsel %vm235, %v237, %v239
    %v241 = vrot.slane %v137, 4
    %v242 = vsel %vm235, %v239, %v241
    %v243 = vrot.slane %v138, 4
    %v244 = vsel %vm235, %v241, %v243
    %v245 = vrot.slane %v139, 4
    %v246 = vrot.slane %v140, 4
    %v247 = vsel %vm235, %v245, %v246
    %v248 = vrot.slane %v141, 4
    %v249 = vsel %vm235, %v246, %v248
    %v250 = vrot.slane %v142, 4
    %v251 = vsel %vm235, %v248, %v250
    %v252 = vrot.slane %v143, 4
    %v253 = vsel %vm235, %v250, %v252
    %v262 = vld [vmem:[#allocation2] sm:$0xff]
    %v263 = vld [vmem:[#allocation2 + $0x8] sm:$0xff]
    %v264 = vld [vmem:[#allocation2 + $0x10] sm:$0xff]
    %v265 = vld [vmem:[#allocation2 + $0x18] sm:$0xff]
    %v266 = vld [vmem:[#allocation2 + $0x20] sm:$0xff]
    %v267 = vld [vmem:[#allocation2 + $0x28] sm:$0xff]
    %v268 = vld [vmem:[#allocation2 + $0x30] sm:$0xff]
    %v269 = vld [vmem:[#allocation2 + $0x38] sm:$0xff]
    %v270 = vld [vmem:[#allocation2 + $0x40] sm:$0xff]
    %v271 = vld [vmem:[#allocation2 + $0x48] sm:$0xff]
    %v272 = vld [vmem:[#allocation2 + $0x50] sm:$0xff]
    %v273 = vld [vmem:[#allocation2 + $0x58] sm:$0xff]
    %v274 = vld [vmem:[#allocation2 + $0x60] sm:$0xff]
    %v275 = vld [vmem:[#allocation2 + $0x68] sm:$0xff]
    %v276 = vld [vmem:[#allocation2 + $0x70] sm:$0xff]
    %v277 = vld [vmem:[#allocation2 + $0x78] sm:$0xff]
    %v278 = vld [vmem:[#allocation2 + $0x80] sm:$0xff]
    %v279 = vld [vmem:[#allocation2 + $0x88] sm:$0xff]
    %v280 = vld [vmem:[#allocation2 + $0x90] sm:$0xff]
    %v281 = vld [vmem:[#allocation2 + $0x98] sm:$0xff]
    %v282 = vld [vmem:[#allocation2 + $0xa0] sm:$0xff]
    %v283 = vld [vmem:[#allocation2 + $0xa8] sm:$0xff]
    %v284 = vld [vmem:[#allocation2 + $0xb0] sm:$0xff]
    %v285 = vld [vmem:[#allocation2 + $0xb8] sm:$0xff]
    %v286 = vld [vmem:[#allocation2 + $0xc0] sm:$0xff]
    %v287 = vld [vmem:[#allocation2 + $0xc8] sm:$0xff]
    %v288 = vld [vmem:[#allocation2 + $0xd0] sm:$0xff]
    %v289 = vld [vmem:[#allocation2 + $0xd8] sm:$0xff]
    %v290 = vld [vmem:[#allocation2 + $0xe0] sm:$0xff]
    %v291 = vld [vmem:[#allocation2 + $0xe8] sm:$0xff]
    %v292 = vld [vmem:[#allocation2 + $0xf0] sm:$0xff]
    %v293 = vld [vmem:[#allocation2 + $0xf8] sm:$0xff]
    %v294 = vld [vmem:[#allocation2 + $0x100] sm:$0xff]
    %v295 = vld [vmem:[#allocation2 + $0x108] sm:$0xff]
    %v296 = vld [vmem:[#allocation2 + $0x110] sm:$0xff]
    %v297 = vld [vmem:[#allocation2 + $0x118] sm:$0xff]
    %v298 = vld [vmem:[#allocation2 + $0x120] sm:$0xff]
    %v299 = vld [vmem:[#allocation2 + $0x128] sm:$0xff]
    %v300 = vld [vmem:[#allocation2 + $0x130] sm:$0xff]
    %v301 = vld [vmem:[#allocation2 + $0x138] sm:$0xff]
    %v302 = vld [vmem:[#allocation2 + $0x140] sm:$0xff]
    %v303 = vld [vmem:[#allocation2 + $0x148] sm:$0xff]
    %v304 = vld [vmem:[#allocation2 + $0x150] sm:$0xff]
    %v305 = vld [vmem:[#allocation2 + $0x158] sm:$0xff]
    %v306 = vld [vmem:[#allocation2 + $0x160] sm:$0xff]
    %v307 = vld [vmem:[#allocation2 + $0x168] sm:$0xff]
    %v308 = vld [vmem:[#allocation2 + $0x170] sm:$0xff]
    %v309 = vld [vmem:[#allocation2 + $0x178] sm:$0xff]
    %v310 = vld [vmem:[#allocation2 + $0x180] sm:$0xff]
    %v311 = vld [vmem:[#allocation2 + $0x188] sm:$0xff]
    %v312 = vld [vmem:[#allocation2 + $0x190] sm:$0xff]
    %v313 = vld [vmem:[#allocation2 + $0x198] sm:$0xff]
    %v314 = vld [vmem:[#allocation2 + $0x1a0] sm:$0xff]
    %v315 = vld [vmem:[#allocation2 + $0x1a8] sm:$0xff]
    %v316 = vld [vmem:[#allocation2 + $0x1b0] sm:$0xff]
    %v317 = vld [vmem:[#allocation2 + $0x1b8] sm:$0xff]
    %v318 = vld [vmem:[#allocation2 + $0x1c0] sm:$0xff]
    %v319 = vld [vmem:[#allocation2 + $0x1c8] sm:$0xff]
    %v320 = vld [vmem:[#allocation2 + $0x1d0] sm:$0xff]
    %v321 = vld [vmem:[#allocation2 + $0x1d8] sm:$0xff]
    %v322 = vld [vmem:[#allocation2 + $0x1e0] sm:$0xff]
    %v323 = vld [vmem:[#allocation2 + $0x1e8] sm:$0xff]
    %v324 = vld [vmem:[#allocation2 + $0x1f0] sm:$0xff]
    %v325 = vld [vmem:[#allocation2 + $0x1f8] sm:$0xff]
    %v326 = vld [vmem:[#allocation2 + $0x200] sm:$0xff]
    %v327 = vld [vmem:[#allocation2 + $0x208] sm:$0xff]
    %v328 = vld [vmem:[#allocation2 + $0x210] sm:$0xff]
    %v329 = vld [vmem:[#allocation2 + $0x218] sm:$0xff]
    %v330 = vld [vmem:[#allocation2 + $0x220] sm:$0xff]
    %v331 = vld [vmem:[#allocation2 + $0x228] sm:$0xff]
    %v332 = vld [vmem:[#allocation2 + $0x230] sm:$0xff]
    %v333 = vld [vmem:[#allocation2 + $0x238] sm:$0xff]
    %v334 = vld [vmem:[#allocation2 + $0x240] sm:$0xff]
    %v335 = vld [vmem:[#allocation2 + $0x248] sm:$0xff]
    %v336 = vld [vmem:[#allocation2 + $0x250] sm:$0xff]
    %v337 = vld [vmem:[#allocation2 + $0x258] sm:$0xff]
    %v338 = vld [vmem:[#allocation2 + $0x260] sm:$0xff]
    %v339 = vld [vmem:[#allocation2 + $0x268] sm:$0xff]
    %v340 = vld [vmem:[#allocation2 + $0x270] sm:$0xff]
    %v341 = vld [vmem:[#allocation2 + $0x278] sm:$0xff]
    %v342 = vld [vmem:[#allocation2 + $0x280] sm:$0xff]
    %v343 = vld [vmem:[#allocation2 + $0x288] sm:$0xff]
    %v344 = vld [vmem:[#allocation2 + $0x290] sm:$0xff]
    %v345 = vld [vmem:[#allocation2 + $0x298] sm:$0xff]
    %v346 = vld [vmem:[#allocation2 + $0x2a0] sm:$0xff]
    %v347 = vld [vmem:[#allocation2 + $0x2a8] sm:$0xff]
    %v348 = vld [vmem:[#allocation2 + $0x2b0] sm:$0xff]
    %v349 = vld [vmem:[#allocation2 + $0x2b8] sm:$0xff]
    %v350 = vld [vmem:[#allocation2 + $0x2c0] sm:$0xff]
    %v351 = vld [vmem:[#allocation2 + $0x2c8] sm:$0xff]
    %v352 = vld [vmem:[#allocation2 + $0x2d0] sm:$0xff]
    %v353 = vld [vmem:[#allocation2 + $0x2d8] sm:$0xff]
    %v354 = vld [vmem:[#allocation2 + $0x2e0] sm:$0xff]
    %v355 = vld [vmem:[#allocation2 + $0x2e8] sm:$0xff]
    %v356 = vld [vmem:[#allocation2 + $0x2f0] sm:$0xff]
    %v357 = vld [vmem:[#allocation2 + $0x2f8] sm:$0xff]
    %v358 = vld [vmem:[#allocation2 + $0x300] sm:$0xff]
    %v359 = vld [vmem:[#allocation2 + $0x308] sm:$0xff]
    %v360 = vld [vmem:[#allocation2 + $0x310] sm:$0xff]
    %v361 = vld [vmem:[#allocation2 + $0x318] sm:$0xff]
    %v362 = vld [vmem:[#allocation2 + $0x320] sm:$0xff]
    %v363 = vld [vmem:[#allocation2 + $0x328] sm:$0xff]
    %v364 = vld [vmem:[#allocation2 + $0x330] sm:$0xff]
    %v365 = vld [vmem:[#allocation2 + $0x338] sm:$0xff]
    %v366 = vld [vmem:[#allocation2 + $0x340] sm:$0xff]
    %v367 = vld [vmem:[#allocation2 + $0x348] sm:$0xff]
    %v368 = vld [vmem:[#allocation2 + $0x350] sm:$0xff]
    %v369 = vld [vmem:[#allocation2 + $0x358] sm:$0xff]
    %v370 = vld [vmem:[#allocation2 + $0x360] sm:$0xff]
    %v371 = vld [vmem:[#allocation2 + $0x368] sm:$0xff]
    %v372 = vld [vmem:[#allocation2 + $0x370] sm:$0xff]
    %v373 = vld [vmem:[#allocation2 + $0x378] sm:$0xff]
    %v374 = vld [vmem:[#allocation2 + $0x380] sm:$0xff]
    %v375 = vld [vmem:[#allocation2 + $0x388] sm:$0xff]
    %v376 = vld [vmem:[#allocation2 + $0x390] sm:$0xff]
    %v377 = vld [vmem:[#allocation2 + $0x398] sm:$0xff]
    %v378 = vld [vmem:[#allocation2 + $0x3a0] sm:$0xff]
    %v379 = vld [vmem:[#allocation2 + $0x3a8] sm:$0xff]
    %v380 = vld [vmem:[#allocation2 + $0x3b0] sm:$0xff]
    %v381 = vld [vmem:[#allocation2 + $0x3b8] sm:$0xff]
    %v382 = vld [vmem:[#allocation2 + $0x3c0] sm:$0xff]
    %v383 = vld [vmem:[#allocation2 + $0x3c8] sm:$0xff]
    %v384 = vld [vmem:[#allocation2 + $0x3d0] sm:$0xff]
    %v385 = vld [vmem:[#allocation2 + $0x3d8] sm:$0xff]
    %v386 = vld [vmem:[#allocation2 + $0x3e0] sm:$0xff]
    %v387 = vld [vmem:[#allocation2 + $0x3e8] sm:$0xff]
    %v388 = vld [vmem:[#allocation2 + $0x3f0] sm:$0xff]
    %v389 = vld [vmem:[#allocation2 + $0x3f8] sm:$0xff]
    %v390 = vld [vmem:[#allocation2 + $0x400] sm:$0xff]
    %v391 = vld [vmem:[#allocation2 + $0x408] sm:$0xff]
    %v392 = vld [vmem:[#allocation2 + $0x410] sm:$0xff]
    %v393 = vld [vmem:[#allocation2 + $0x418] sm:$0xff]
    %v394 = vld [vmem:[#allocation2 + $0x420] sm:$0xff]
    %v395 = vld [vmem:[#allocation2 + $0x428] sm:$0xff]
    %v396 = vld [vmem:[#allocation2 + $0x430] sm:$0xff]
    %v397 = vld [vmem:[#allocation2 + $0x438] sm:$0xff]
    %v398 = vld [vmem:[#allocation2 + $0x440] sm:$0xff]
    %v399 = vld [vmem:[#allocation2 + $0x448] sm:$0xff]
    %v400 = vld [vmem:[#allocation2 + $0x450] sm:$0xff]
    %v401 = vld [vmem:[#allocation2 + $0x458] sm:$0xff]
    %v402 = vld [vmem:[#allocation2 + $0x460] sm:$0xff]
    %v403 = vld [vmem:[#allocation2 + $0x468] sm:$0xff]
    %v404 = vld [vmem:[#allocation2 + $0x470] sm:$0xff]
    %v405 = vld [vmem:[#allocation2 + $0x478] sm:$0xff]
    %v406 = vld [vmem:[#allocation2 + $0x480] sm:$0xff]
    %v407 = vld [vmem:[#allocation2 + $0x488] sm:$0xff]
    %v408 = vld [vmem:[#allocation2 + $0x490] sm:$0xff]
    %v409 = vld [vmem:[#allocation2 + $0x498] sm:$0xff]
    %v410 = vld [vmem:[#allocation2 + $0x4a0] sm:$0xff]
    %v411 = vld [vmem:[#allocation2 + $0x4a8] sm:$0xff]
    %v412 = vld [vmem:[#allocation2 + $0x4b0] sm:$0xff]
    %v413 = vld [vmem:[#allocation2 + $0x4b8] sm:$0xff]
    %v414 = vld [vmem:[#allocation2 + $0x4c0] sm:$0xff]
    %v415 = vld [vmem:[#allocation2 + $0x4c8] sm:$0xff]
    %v416 = vld [vmem:[#allocation2 + $0x4d0] sm:$0xff]
    %v417 = vld [vmem:[#allocation2 + $0x4d8] sm:$0xff]
    %v418 = vld [vmem:[#allocation2 + $0x4e0] sm:$0xff]
    %v419 = vld [vmem:[#allocation2 + $0x4e8] sm:$0xff]
    %v420 = vld [vmem:[#allocation2 + $0x4f0] sm:$0xff]
    %v421 = vld [vmem:[#allocation2 + $0x4f8] sm:$0xff]
    %v422 = vld [vmem:[#allocation5] sm:$0x3]
    %v424 = vlaneseq
    %v425 = vshrl.u32 %v424, 7
    %v426 = vsub.s32 0, %v425
    %v427 = vrot.slane %v422, %v426
    %v428 = vlaneseq
    %v429 = vshrl.u32 %v428, 7
    %v430 = vsub.s32 1, %v429
    %v431 = vrot.slane %v422, %v430
    %434 = vmatprep.subr.mxu0 %v263
    %435 = vmatpush1.msra.mxu0 %v262
    %436 = vmatprep.subr.mxu0 %v265
    %437 = vmatpush1.msra.mxu0 %v264
    %438 = vmatprep.subr.mxu0 %v267
    %439 = vmatpush1.msra.mxu0 %v266
    %440 = vmatprep.subr.mxu0 %v269
    %441 = vmatpush1.msra.mxu0 %v268
    %442 = vmatprep.subr.mxu0 %v271
    %443 = vmatpush1.msra.mxu0 %v270
    %444 = vmatprep.subr.mxu0 %v273
    %445 = vmatpush1.msra.mxu0 %v272
    %446 = vmatprep.subr.mxu0 %v275
    %447 = vmatpush1.msra.mxu0 %v274
    %448 = vmatprep.subr.mxu0 %v277
    %449 = vmatpush1.msra.mxu0 %v276
    %450 = vmatprep.subr.mxu0 %v279
    %451 = vmatpush1.msra.mxu0 %v278
    %452 = vmatprep.subr.mxu0 %v281
    %453 = vmatpush1.msra.mxu0 %v280
    %454 = vmatprep.subr.mxu0 %v283
    %455 = vmatpush1.msra.mxu0 %v282
    %456 = vmatprep.subr.mxu0 %v285
    %457 = vmatpush1.msra.mxu0 %v284
    %458 = vmatprep.subr.mxu0 %v287
    %459 = vmatpush1.msra.mxu0 %v286
    %460 = vmatprep.subr.mxu0 %v289
    %461 = vmatpush1.msra.mxu0 %v288
    %462 = vmatprep.subr.mxu0 %v291
    %463 = vmatpush1.msra.mxu0 %v290
    %464 = vmatprep.subr.mxu0 %v293
    %465 = vmatpush1.msra.mxu0 %v292
    %466 = vmatprep.subr.mxu0 %v295
    %467 = vmatpush1.msra.mxu0 %v294
    %468 = vmatprep.subr.mxu0 %v297
    %469 = vmatpush1.msra.mxu0 %v296
    %470 = vmatprep.subr.mxu0 %v299
    %471 = vmatpush1.msra.mxu0 %v298
    %472 = vmatprep.subr.mxu0 %v301
    %473 = vmatpush1.msra.mxu0 %v300
    %474 = vmatprep.subr.mxu0 %v303
    %475 = vmatpush1.msra.mxu0 %v302
    %476 = vmatprep.subr.mxu0 %v305
    %477 = vmatpush1.msra.mxu0 %v304
    %478 = vmatprep.subr.mxu0 %v307
    %479 = vmatpush1.msra.mxu0 %v306
    %480 = vmatprep.subr.mxu0 %v309
    %481 = vmatpush1.msra.mxu0 %v308
    %482 = vmatprep.subr.mxu0 %v311
    %483 = vmatpush1.msra.mxu0 %v310
    %484 = vmatprep.subr.mxu0 %v313
    %485 = vmatpush1.msra.mxu0 %v312
    %486 = vmatprep.subr.mxu0 %v315
    %487 = vmatpush1.msra.mxu0 %v314
    %488 = vmatprep.subr.mxu0 %v317
    %489 = vmatpush1.msra.mxu0 %v316
    %490 = vmatprep.subr.mxu0 %v319
    %491 = vmatpush1.msra.mxu0 %v318
    %492 = vmatprep.subr.mxu0 %v321
    %493 = vmatpush1.msra.mxu0 %v320
    %494 = vmatprep.subr.mxu0 %v323
    %495 = vmatpush1.msra.mxu0 %v322
    %496 = vmatprep.subr.mxu0 %v325
    %497 = vmatpush1.msra.mxu0 %v324
    %498 = vmatprep.mubr.f32.mxu0 %v157
    %499 = vmatmul.mubr.f32.gmra.mrb[0].mxu0 %v134
    %v500 = vpop.f32.mrb[0].mxu0
    %v501 = vadd.f32 %v427, %v500
    %v502 = vpop.f32.mrb[0].mxu0
    %v503 = vadd.f32 %v431, %v502
    %504 = vmatprep.mubr.f32.mxu0 %v159
    %505 = vmatmul.mubr.f32.gmra.mrb[0].mxu0 %v135
    %v506 = vpop.f32.mrb[0].mxu0
    %v507 = vadd.f32 %v427, %v506
    %v508 = vpop.f32.mrb[0].mxu0
    %v509 = vadd.f32 %v431, %v508
    %510 = vmatprep.mubr.f32.mxu0 %v161
    %511 = vmatmul.mubr.f32.gmra.mrb[0].mxu0 %v136
    %v512 = vpop.f32.mrb[0].mxu0
    %v513 = vadd.f32 %v427, %v512
    %v514 = vpop.f32.mrb[0].mxu0
    %v515 = vadd.f32 %v431, %v514
    %516 = vmatprep.mubr.f32.mxu0 %v163
    %517 = vmatmul.mubr.f32.gmra.mrb[0].mxu0 %v137
    %v518 = vpop.f32.mrb[0].mxu0
    %v519 = vadd.f32 %v427, %v518
    %v520 = vpop.f32.mrb[0].mxu0
    %v521 = vadd.f32 %v431, %v520
    %522 = vmatprep.mubr.f32.mxu0 %v166
    %523 = vmatmul.mubr.f32.gmra.mrb[0].mxu0 %v139
    %v524 = vpop.f32.mrb[0].mxu0
    %v525 = vadd.f32 %v427, %v524
    %v526 = vpop.f32.mrb[0].mxu0
    %v527 = vadd.f32 %v431, %v526
    %528 = vmatprep.mubr.f32.mxu0 %v168
    %529 = vmatmul.mubr.f32.gmra.mrb[0].mxu0 %v140
    %v530 = vpop.f32.mrb[0].mxu0
    %v531 = vadd.f32 %v427, %v530
    %v532 = vpop.f32.mrb[0].mxu0
    %v533 = vadd.f32 %v431, %v532
    %534 = vmatprep.mubr.f32.mxu0 %v170
    %535 = vmatmul.mubr.f32.gmra.mrb[0].mxu0 %v141
    %v536 = vpop.f32.mrb[0].mxu0
    %v537 = vadd.f32 %v427, %v536
    %v538 = vpop.f32.mrb[0].mxu0
    %v539 = vadd.f32 %v431, %v538
    %540 = vmatprep.mubr.f32.mxu0 %v172
    %541 = vmatmul.mubr.f32.gmra.mrb[0].mxu0 %v142
    %v542 = vpop.f32.mrb[0].mxu0
    %v543 = vadd.f32 %v427, %v542
    %v544 = vpop.f32.mrb[0].mxu0
    %v545 = vadd.f32 %v431, %v544
    %546 = vdwg.mxu0
    %547 = vmatprep.subr.mxu0 %v327
    %548 = vmatpush1.msra.mxu0 %v326
    %549 = vmatprep.subr.mxu0 %v329
    %550 = vmatpush1.msra.mxu0 %v328
    %551 = vmatprep.subr.mxu0 %v331
    %552 = vmatpush1.msra.mxu0 %v330
    %553 = vmatprep.subr.mxu0 %v333
    %554 = vmatpush1.msra.mxu0 %v332
    %555 = vmatprep.subr.mxu0 %v335
    %556 = vmatpush1.msra.mxu0 %v334
    %557 = vmatprep.subr.mxu0 %v337
    %558 = vmatpush1.msra.mxu0 %v336
    %559 = vmatprep.subr.mxu0 %v339
    %560 = vmatpush1.msra.mxu0 %v338
    %561 = vmatprep.subr.mxu0 %v341
    %562 = vmatpush1.msra.mxu0 %v340
    %563 = vmatprep.subr.mxu0 %v343
    %564 = vmatpush1.msra.mxu0 %v342
    %565 = vmatprep.subr.mxu0 %v345
    %566 = vmatpush1.msra.mxu0 %v344
    %567 = vmatprep.subr.mxu0 %v347
    %568 = vmatpush1.msra.mxu0 %v346
    %569 = vmatprep.subr.mxu0 %v349
    %570 = vmatpush1.msra.mxu0 %v348
    %571 = vmatprep.subr.mxu0 %v351
    %572 = vmatpush1.msra.mxu0 %v350
    %573 = vmatprep.subr.mxu0 %v353
    %574 = vmatpush1.msra.mxu0 %v352
    %575 = vmatprep.subr.mxu0 %v355
    %576 = vmatpush1.msra.mxu0 %v354
    %577 = vmatprep.subr.mxu0 %v357
    %578 = vmatpush1.msra.mxu0 %v356
    %579 = vmatprep.subr.mxu0 %v359
    %580 = vmatpush1.msra.mxu0 %v358
    %581 = vmatprep.subr.mxu0 %v361
    %582 = vmatpush1.msra.mxu0 %v360
    %583 = vmatprep.subr.mxu0 %v363
    %584 = vmatpush1.msra.mxu0 %v362
    %585 = vmatprep.subr.mxu0 %v365
    %586 = vmatpush1.msra.mxu0 %v364
    %587 = vmatprep.subr.mxu0 %v367
    %588 = vmatpush1.msra.mxu0 %v366
    %589 = vmatprep.subr.mxu0 %v369
    %590 = vmatpush1.msra.mxu0 %v368
    %591 = vmatprep.subr.mxu0 %v371
    %592 = vmatpush1.msra.mxu0 %v370
    %593 = vmatprep.subr.mxu0 %v373
    %594 = vmatpush1.msra.mxu0 %v372
    %595 = vmatprep.subr.mxu0 %v375
    %596 = vmatpush1.msra.mxu0 %v374
    %597 = vmatprep.subr.mxu0 %v377
    %598 = vmatpush1.msra.mxu0 %v376
    %599 = vmatprep.subr.mxu0 %v379
    %600 = vmatpush1.msra.mxu0 %v378
    %601 = vmatprep.subr.mxu0 %v381
    %602 = vmatpush1.msra.mxu0 %v380
    %603 = vmatprep.subr.mxu0 %v383
    %604 = vmatpush1.msra.mxu0 %v382
    %605 = vmatprep.subr.mxu0 %v385
    %606 = vmatpush1.msra.mxu0 %v384
    %607 = vmatprep.subr.mxu0 %v387
    %608 = vmatpush1.msra.mxu0 %v386
    %609 = vmatprep.subr.mxu0 %v389
    %610 = vmatpush1.msra.mxu0 %v388
    %611 = vmatprep.mubr.f32.mxu0 %v211
    %612 = vmatmul.mubr.f32.gmra.mrb[0].mxu0 %v184
    %v613 = vpop.f32.mrb[0].mxu0
    %v614 = vadd.f32 %v501, %v613
    %v615 = vpop.f32.mrb[0].mxu0
    %v616 = vadd.f32 %v503, %v615
    %617 = vmatprep.mubr.f32.mxu0 %v213
    %618 = vmatmul.mubr.f32.gmra.mrb[0].mxu0 %v186
    %v619 = vpop.f32.mrb[0].mxu0
    %v620 = vadd.f32 %v507, %v619
    %v621 = vpop.f32.mrb[0].mxu0
    %v622 = vadd.f32 %v509, %v621
    %623 = vmatprep.mubr.f32.mxu0 %v215
    %624 = vmatmul.mubr.f32.gmra.mrb[0].mxu0 %v188
    %v625 = vpop.f32.mrb[0].mxu0
    %v626 = vadd.f32 %v513, %v625
    %v627 = vpop.f32.mrb[0].mxu0
    %v628 = vadd.f32 %v515, %v627
    %629 = vmatprep.mubr.f32.mxu0 %v217
    %630 = vmatmul.mubr.f32.gmra.mrb[0].mxu0 %v190
    %v631 = vpop.f32.mrb[0].mxu0
    %v632 = vadd.f32 %v519, %v631
    %v633 = vpop.f32.mrb[0].mxu0
    %v634 = vadd.f32 %v521, %v633
    %635 = vmatprep.mubr.f32.mxu0 %v220
    %636 = vmatmul.mubr.f32.gmra.mrb[0].mxu0 %v193
    %v637 = vpop.f32.mrb[0].mxu0
    %v638 = vadd.f32 %v525, %v637
    %v639 = vpop.f32.mrb[0].mxu0
    %v640 = vadd.f32 %v527, %v639
    %641 = vmatprep.mubr.f32.mxu0 %v222
    %642 = vmatmul.mubr.f32.gmra.mrb[0].mxu0 %v195
    %v643 = vpop.f32.mrb[0].mxu0
    %v644 = vadd.f32 %v531, %v643
    %v645 = vpop.f32.mrb[0].mxu0
    %v646 = vadd.f32 %v533, %v645
    %647 = vmatprep.mubr.f32.mxu0 %v224
    %648 = vmatmul.mubr.f32.gmra.mrb[0].mxu0 %v197
    %v649 = vpop.f32.mrb[0].mxu0
    %v650 = vadd.f32 %v537, %v649
    %v651 = vpop.f32.mrb[0].mxu0
    %v652 = vadd.f32 %v539, %v651
    %653 = vmatprep.mubr.f32.mxu0 %v226
    %654 = vmatmul.mubr.f32.gmra.mrb[0].mxu0 %v199
    %v655 = vpop.f32.mrb[0].mxu0
    %v656 = vadd.f32 %v543, %v655
    %v657 = vpop.f32.mrb[0].mxu0
    %v658 = vadd.f32 %v545, %v657
    %659 = vdwg.mxu0
    %660 = vmatprep.subr.mxu0 %v391
    %661 = vmatpush1.msra.mxu0 %v390
    %662 = vmatprep.subr.mxu0 %v393
    %663 = vmatpush1.msra.mxu0 %v392
    %664 = vmatprep.subr.mxu0 %v395
    %665 = vmatpush1.msra.mxu0 %v394
    %666 = vmatprep.subr.mxu0 %v397
    %667 = vmatpush1.msra.mxu0 %v396
    %668 = vmatprep.subr.mxu0 %v399
    %669 = vmatpush1.msra.mxu0 %v398
    %670 = vmatprep.subr.mxu0 %v401
    %671 = vmatpush1.msra.mxu0 %v400
    %672 = vmatprep.subr.mxu0 %v403
    %673 = vmatpush1.msra.mxu0 %v402
    %674 = vmatprep.subr.mxu0 %v405
    %675 = vmatpush1.msra.mxu0 %v404
    %676 = vmatprep.subr.mxu0 %v407
    %677 = vmatpush1.msra.mxu0 %v406
    %678 = vmatprep.subr.mxu0 %v409
    %679 = vmatpush1.msra.mxu0 %v408
    %680 = vmatprep.subr.mxu0 %v411
    %681 = vmatpush1.msra.mxu0 %v410
    %682 = vmatprep.subr.mxu0 %v413
    %683 = vmatpush1.msra.mxu0 %v412
    %684 = vmatprep.subr.mxu0 %v415
    %685 = vmatpush1.msra.mxu0 %v414
    %686 = vmatprep.subr.mxu0 %v417
    %687 = vmatpush1.msra.mxu0 %v416
    %688 = vmatprep.subr.mxu0 %v419
    %689 = vmatpush1.msra.mxu0 %v418
    %690 = vmatprep.subr.mxu0 %v421
    %691 = vmatpush1.msra.mxu0 %v420
    %692 = vmatprep.subr.mxu0 0.0
    %693 = vmatpush1.msra.mxu0 0.0
    %694 = vmatprep.subr.mxu0 0.0
    %695 = vmatpush1.msra.mxu0 0.0
    %696 = vmatprep.subr.mxu0 0.0
    %697 = vmatpush1.msra.mxu0 0.0
    %698 = vmatprep.subr.mxu0 0.0
    %699 = vmatpush1.msra.mxu0 0.0
    %700 = vmatprep.subr.mxu0 0.0
    %701 = vmatpush1.msra.mxu0 0.0
    %702 = vmatprep.subr.mxu0 0.0
    %703 = vmatpush1.msra.mxu0 0.0
    %704 = vmatprep.subr.mxu0 0.0
    %705 = vmatpush1.msra.mxu0 0.0
    %706 = vmatprep.subr.mxu0 0.0
    %707 = vmatpush1.msra.mxu0 0.0
    %708 = vmatprep.subr.mxu0 0.0
    %709 = vmatpush1.msra.mxu0 0.0
    %710 = vmatprep.subr.mxu0 0.0
    %711 = vmatpush1.msra.mxu0 0.0
    %712 = vmatprep.subr.mxu0 0.0
    %713 = vmatpush1.msra.mxu0 0.0
    %714 = vmatprep.subr.mxu0 0.0
    %715 = vmatpush1.msra.mxu0 0.0
    %716 = vmatprep.subr.mxu0 0.0
    %717 = vmatpush1.msra.mxu0 0.0
    %718 = vmatprep.subr.mxu0 0.0
    %719 = vmatpush1.msra.mxu0 0.0
    %720 = vmatprep.subr.mxu0 0.0
    %721 = vmatpush1.msra.mxu0 0.0
    %722 = vmatprep.subr.mxu0 0.0
    %723 = vmatpush1.msra.mxu0 0.0
    %724 = vmatprep.mubr.f32.mxu0 0.0
    %725 = vmatmul.mubr.f32.gmra.mrb[0].mxu0 %v238
    %v726 = vpop.f32.mrb[0].mxu0
    %v727 = vadd.f32 %v614, %v726
    %v728 = vpop.f32.mrb[0].mxu0
    %v729 = vadd.f32 %v616, %v728
    %730 = vmatprep.mubr.f32.mxu0 0.0
    %731 = vmatmul.mubr.f32.gmra.mrb[0].mxu0 %v240
    %v732 = vpop.f32.mrb[0].mxu0
    %v733 = vadd.f32 %v620, %v732
    %v734 = vpop.f32.mrb[0].mxu0
    %v735 = vadd.f32 %v622, %v734
    %736 = vmatprep.mubr.f32.mxu0 0.0
    %737 = vmatmul.mubr.f32.gmra.mrb[0].mxu0 %v242
    %v738 = vpop.f32.mrb[0].mxu0
    %v739 = vadd.f32 %v626, %v738
    %v740 = vpop.f32.mrb[0].mxu0
    %v741 = vadd.f32 %v628, %v740
    %742 = vmatprep.mubr.f32.mxu0 0.0
    %743 = vmatmul.mubr.f32.gmra.mrb[0].mxu0 %v244
    %v744 = vpop.f32.mrb[0].mxu0
    %v745 = vadd.f32 %v632, %v744
    %v746 = vpop.f32.mrb[0].mxu0
    %v747 = vadd.f32 %v634, %v746
    %748 = vmatprep.mubr.f32.mxu0 0.0
    %749 = vmatmul.mubr.f32.gmra.mrb[0].mxu0 %v247
    %v750 = vpop.f32.mrb[0].mxu0
    %v751 = vadd.f32 %v638, %v750
    %v752 = vpop.f32.mrb[0].mxu0
    %v753 = vadd.f32 %v640, %v752
    %754 = vmatprep.mubr.f32.mxu0 0.0
    %755 = vmatmul.mubr.f32.gmra.mrb[0].mxu0 %v249
    %v756 = vpop.f32.mrb[0].mxu0
    %v757 = vadd.f32 %v644, %v756
    %v758 = vpop.f32.mrb[0].mxu0
    %v759 = vadd.f32 %v646, %v758
    %760 = vmatprep.mubr.f32.mxu0 0.0
    %761 = vmatmul.mubr.f32.gmra.mrb[0].mxu0 %v251
    %v762 = vpop.f32.mrb[0].mxu0
    %v763 = vadd.f32 %v650, %v762
    %v764 = vpop.f32.mrb[0].mxu0
    %v765 = vadd.f32 %v652, %v764
    %766 = vmatprep.mubr.f32.mxu0 0.0
    %767 = vmatmul.mubr.f32.gmra.mrb[0].mxu0 %v253
    %v768 = vpop.f32.mrb[0].mxu0
    %v769 = vadd.f32 %v656, %v768
    %v770 = vpop.f32.mrb[0].mxu0
    %v771 = vadd.f32 %v658, %v770
    %772 = vdwg.mxu0
    %v789 = vrot.slane %v727, 1
    %v790 = vrot.slane %v733, 1
    %v791 = vsel %vm154, %v789, %v790
    %v792 = vrot.slane %v729, 1
    %v793 = vrot.slane %v735, 1
    %v794 = vsel %vm154, %v792, %v793
    %v795 = vrot.slane %v739, 1
    %v796 = vsel %vm154, %v790, %v795
    %v797 = vrot.slane %v741, 1
    %v798 = vsel %vm154, %v793, %v797
    %v799 = vrot.slane %v745, 1
    %v800 = vsel %vm154, %v795, %v799
    %v801 = vrot.slane %v747, 1
    %v802 = vsel %vm154, %v797, %v801
    %v803 = vrot.slane %v751, 1
    %v804 = vrot.slane %v757, 1
    %v805 = vsel %vm154, %v803, %v804
    %v806 = vrot.slane %v753, 1
    %v807 = vrot.slane %v759, 1
    %v808 = vsel %vm154, %v806, %v807
    %v809 = vrot.slane %v763, 1
    %v810 = vsel %vm154, %v804, %v809
    %v811 = vrot.slane %v765, 1
    %v812 = vsel %vm154, %v807, %v811
    %v813 = vrot.slane %v769, 1
    %v814 = vsel %vm154, %v809, %v813
    %v815 = vrot.slane %v771, 1
    %v816 = vsel %vm154, %v811, %v815
    %v829 = vmax.f32 %v727, %v791
    %v830 = vmax.f32 %v729, %v794
    %v831 = vmax.f32 %v733, %v796
    %v832 = vmax.f32 %v735, %v798
    %v833 = vmax.f32 %v739, %v800
    %v834 = vmax.f32 %v741, %v802
    %v835 = vmax.f32 %v751, %v805
    %v836 = vmax.f32 %v753, %v808
    %v837 = vmax.f32 %v757, %v810
    %v838 = vmax.f32 %v759, %v812
    %v839 = vmax.f32 %v763, %v814
    %v840 = vmax.f32 %v765, %v816
    %853 = vrot.lane.b32.xlu0 %v829, 118
    %v854 = vpop.permute.xlu0 %853
    %855 = vrot.lane.b32.xlu0 %v830, 118
    %v856 = vpop.permute.xlu0 %855
    %857 = vrot.lane.b32.xlu0 %v831, 118
    %v858 = vpop.permute.xlu0 %857
    %859 = vrot.lane.b32.xlu0 %v832, 118
    %v860 = vpop.permute.xlu0 %859
    %861 = vrot.lane.b32.xlu0 %v833, 118
    %v862 = vpop.permute.xlu0 %861
    %863 = vrot.lane.b32.xlu0 %v834, 118
    %v864 = vpop.permute.xlu0 %863
    %865 = vrot.lane.b32.xlu0 %v835, 118
    %v866 = vpop.permute.xlu0 %865
    %867 = vrot.lane.b32.xlu0 %v836, 118
    %v868 = vpop.permute.xlu0 %867
    %869 = vrot.lane.b32.xlu0 %v837, 118
    %v870 = vpop.permute.xlu0 %869
    %871 = vrot.lane.b32.xlu0 %v838, 118
    %v872 = vpop.permute.xlu0 %871
    %873 = vrot.lane.b32.xlu0 %v839, 118
    %v874 = vpop.permute.xlu0 %873
    %875 = vrot.lane.b32.xlu0 %v840, 118
    %v876 = vpop.permute.xlu0 %875
    %vm877 = vcmask 965632
    %v878 = vsel %vm877, %v854, %v856
    %v879 = vsel %vm877, %v858, %v860
    %v880 = vsel %vm877, %v862, %v864
    %v881 = vsel %vm877, %v866, %v868
    %v882 = vsel %vm877, %v870, %v872
    %v883 = vsel %vm877, %v874, %v876
    %v902 = vsel %vm877, %v856, %v854
    %v903 = vsel %vm877, %v860, %v858
    %v904 = vsel %vm877, %v864, %v862
    %v905 = vsel %vm877, %v868, %v866
    %v906 = vsel %vm877, %v872, %v870
    %v907 = vsel %vm877, %v876, %v874
    %v908 = vmax.f32 %v829, %v878
    %v909 = vmax.f32 %v830, %v902
    %v910 = vmax.f32 %v831, %v879
    %v911 = vmax.f32 %v832, %v903
    %v912 = vmax.f32 %v833, %v880
    %v913 = vmax.f32 %v834, %v904
    %v914 = vmax.f32 %v835, %v881
    %v915 = vmax.f32 %v836, %v905
    %v916 = vmax.f32 %v837, %v882
    %v917 = vmax.f32 %v838, %v906
    %v918 = vmax.f32 %v839, %v883
    %v919 = vmax.f32 %v840, %v907
    %v920 = vmax.f32 %v908, 0.0
    %v921 = vmax.f32 %v909, 0.0
    %v922 = vmax.f32 %v910, 0.0
    %v923 = vmax.f32 %v911, 0.0
    %v924 = vmax.f32 %v912, 0.0
    %v925 = vmax.f32 %v913, 0.0
    %v926 = vmax.f32 %v914, 0.0
    %v927 = vmax.f32 %v915, 0.0
    %v928 = vmax.f32 %v916, 0.0
    %v929 = vmax.f32 %v917, 0.0
    %v930 = vmax.f32 %v918, 0.0
    %v931 = vmax.f32 %v919, 0.0
    %v944 = vrot.slane %v920, 2
    %v945 = vrot.slane %v922, 2
    %v946 = vsel %vm181, %v944, %v945
    %v947 = vrot.slane %v921, 2
    %v948 = vrot.slane %v923, 2
    %v949 = vsel %vm181, %v947, %v948
    %v950 = vrot.slane %v924, 2
    %v951 = vsel %vm181, %v945, %v950
    %v952 = vrot.slane %v925, 2
    %v953 = vsel %vm181, %v948, %v952
    %v954 = vrot.slane %v926, 2
    %v955 = vrot.slane %v928, 2
    %v956 = vsel %vm181, %v954, %v955
    %v957 = vrot.slane %v927, 2
    %v958 = vrot.slane %v929, 2
    %v959 = vsel %vm181, %v957, %v958
    %v960 = vrot.slane %v930, 2
    %v961 = vsel %vm181, %v955, %v960
    %v962 = vrot.slane %v931, 2
    %v963 = vsel %vm181, %v958, %v962
    %v972 = vrot.slane %v920, 4
    %v973 = vrot.slane %v922, 4
    %v974 = vsel %vm235, %v972, %v973
    %v975 = vrot.slane %v921, 4
    %v976 = vrot.slane %v923, 4
    %v977 = vsel %vm235, %v975, %v976
    %v978 = vrot.slane %v924, 4
    %v979 = vsel %vm235, %v973, %v978
    %v980 = vrot.slane %v925, 4
    %v981 = vsel %vm235, %v976, %v980
    %v982 = vrot.slane %v926, 4
    %v983 = vrot.slane %v928, 4
    %v984 = vsel %vm235, %v982, %v983
    %v985 = vrot.slane %v927, 4
    %v986 = vrot.slane %v929, 4
    %v987 = vsel %vm235, %v985, %v986
    %v988 = vrot.slane %v930, 4
    %v989 = vsel %vm235, %v983, %v988
    %v990 = vrot.slane %v931, 4
    %v991 = vsel %vm235, %v986, %v990
    %vm1000 = vcmask 1041408
    %v1001 = vrot.slane %v920, 6
    %v1002 = vrot.slane %v922, 6
    %v1003 = vsel %vm1000, %v1001, %v1002
    %v1004 = vrot.slane %v921, 6
    %v1005 = vrot.slane %v923, 6
    %v1006 = vsel %vm1000, %v1004, %v1005
    %v1007 = vrot.slane %v924, 6
    %v1008 = vsel %vm1000, %v1002, %v1007
    %v1009 = vrot.slane %v925, 6
    %v1010 = vsel %vm1000, %v1005, %v1009
    %v1011 = vrot.slane %v926, 6
    %v1012 = vrot.slane %v928, 6
    %v1013 = vsel %vm1000, %v1011, %v1012
    %v1014 = vrot.slane %v927, 6
    %v1015 = vrot.slane %v929, 6
    %v1016 = vsel %vm1000, %v1014, %v1015
    %v1017 = vrot.slane %v930, 6
    %v1018 = vsel %vm1000, %v1012, %v1017
    %v1019 = vrot.slane %v931, 6
    %v1020 = vsel %vm1000, %v1015, %v1019
    %v1029 = vld [vmem:[#allocation7] sm:$0xff]
    %v1030 = vld [vmem:[#allocation7 + $0x8] sm:$0xff]
    %v1031 = vld [vmem:[#allocation7 + $0x10] sm:$0xff]
    %v1032 = vld [vmem:[#allocation7 + $0x18] sm:$0xff]
    %v1033 = vld [vmem:[#allocation7 + $0x20] sm:$0xff]
    %v1034 = vld [vmem:[#allocation7 + $0x28] sm:$0xff]
    %v1035 = vld [vmem:[#allocation7 + $0x30] sm:$0xff]
    %v1036 = vld [vmem:[#allocation7 + $0x38] sm:$0xff]
    %v1037 = vld [vmem:[#allocation7 + $0x40] sm:$0xff]
    %v1038 = vld [vmem:[#allocation7 + $0x48] sm:$0xff]
    %v1039 = vld [vmem:[#allocation7 + $0x50] sm:$0xff]
    %v1040 = vld [vmem:[#allocation7 + $0x58] sm:$0xff]
    %v1041 = vld [vmem:[#allocation7 + $0x60] sm:$0xff]
    %v1042 = vld [vmem:[#allocation7 + $0x68] sm:$0xff]
    %v1043 = vld [vmem:[#allocation7 + $0x70] sm:$0xff]
    %v1044 = vld [vmem:[#allocation7 + $0x78] sm:$0xff]
    %v1045 = vld [vmem:[#allocation7 + $0x80] sm:$0xff]
    %v1046 = vld [vmem:[#allocation7 + $0x88] sm:$0xff]
    %v1047 = vld [vmem:[#allocation7 + $0x90] sm:$0xff]
    %v1048 = vld [vmem:[#allocation7 + $0x98] sm:$0xff]
    %v1049 = vld [vmem:[#allocation7 + $0xa0] sm:$0xff]
    %v1050 = vld [vmem:[#allocation7 + $0xa8] sm:$0xff]
    %v1051 = vld [vmem:[#allocation7 + $0xb0] sm:$0xff]
    %v1052 = vld [vmem:[#allocation7 + $0xb8] sm:$0xff]
    %v1053 = vld [vmem:[#allocation7 + $0xc0] sm:$0xff]
    %v1054 = vld [vmem:[#allocation7 + $0xc8] sm:$0xff]
    %v1055 = vld [vmem:[#allocation7 + $0xd0] sm:$0xff]
    %v1056 = vld [vmem:[#allocation7 + $0xd8] sm:$0xff]
    %v1057 = vld [vmem:[#allocation7 + $0xe0] sm:$0xff]
    %v1058 = vld [vmem:[#allocation7 + $0xe8] sm:$0xff]
    %v1059 = vld [vmem:[#allocation7 + $0xf0] sm:$0xff]
    %v1060 = vld [vmem:[#allocation7 + $0xf8] sm:$0xff]
    %v1061 = vld [vmem:[#allocation7 + $0x100] sm:$0xff]
    %v1062 = vld [vmem:[#allocation7 + $0x108] sm:$0xff]
    %v1063 = vld [vmem:[#allocation7 + $0x110] sm:$0xff]
    %v1064 = vld [vmem:[#allocation7 + $0x118] sm:$0xff]
    %v1065 = vld [vmem:[#allocation7 + $0x120] sm:$0xff]
    %v1066 = vld [vmem:[#allocation7 + $0x128] sm:$0xff]
    %v1067 = vld [vmem:[#allocation7 + $0x130] sm:$0xff]
    %v1068 = vld [vmem:[#allocation7 + $0x138] sm:$0xff]
    %v1069 = vld [vmem:[#allocation7 + $0x140] sm:$0xff]
    %v1070 = vld [vmem:[#allocation7 + $0x148] sm:$0xff]
    %v1071 = vld [vmem:[#allocation7 + $0x150] sm:$0xff]
    %v1072 = vld [vmem:[#allocation7 + $0x158] sm:$0xff]
    %v1073 = vld [vmem:[#allocation7 + $0x160] sm:$0xff]
    %v1074 = vld [vmem:[#allocation7 + $0x168] sm:$0xff]
    %v1075 = vld [vmem:[#allocation7 + $0x170] sm:$0xff]
    %v1076 = vld [vmem:[#allocation7 + $0x178] sm:$0xff]
    %v1077 = vld [vmem:[#allocation7 + $0x180] sm:$0xff]
    %v1078 = vld [vmem:[#allocation7 + $0x188] sm:$0xff]
    %v1079 = vld [vmem:[#allocation7 + $0x190] sm:$0xff]
    %v1080 = vld [vmem:[#allocation7 + $0x198] sm:$0xff]
    %v1081 = vld [vmem:[#allocation7 + $0x1a0] sm:$0xff]
    %v1082 = vld [vmem:[#allocation7 + $0x1a8] sm:$0xff]
    %v1083 = vld [vmem:[#allocation7 + $0x1b0] sm:$0xff]
    %v1084 = vld [vmem:[#allocation7 + $0x1b8] sm:$0xff]
    %v1085 = vld [vmem:[#allocation7 + $0x1c0] sm:$0xff]
    %v1086 = vld [vmem:[#allocation7 + $0x1c8] sm:$0xff]
    %v1087 = vld [vmem:[#allocation7 + $0x1d0] sm:$0xff]
    %v1088 = vld [vmem:[#allocation7 + $0x1d8] sm:$0xff]
    %v1089 = vld [vmem:[#allocation7 + $0x1e0] sm:$0xff]
    %v1090 = vld [vmem:[#allocation7 + $0x1e8] sm:$0xff]
    %v1091 = vld [vmem:[#allocation7 + $0x1f0] sm:$0xff]
    %v1092 = vld [vmem:[#allocation7 + $0x1f8] sm:$0xff]
    %v1093 = vld [vmem:[#allocation7 + $0x200] sm:$0xff]
    %v1094 = vld [vmem:[#allocation7 + $0x208] sm:$0xff]
    %v1095 = vld [vmem:[#allocation7 + $0x210] sm:$0xff]
    %v1096 = vld [vmem:[#allocation7 + $0x218] sm:$0xff]
    %v1097 = vld [vmem:[#allocation7 + $0x220] sm:$0xff]
    %v1098 = vld [vmem:[#allocation7 + $0x228] sm:$0xff]
    %v1099 = vld [vmem:[#allocation7 + $0x230] sm:$0xff]
    %v1100 = vld [vmem:[#allocation7 + $0x238] sm:$0xff]
    %v1101 = vld [vmem:[#allocation7 + $0x240] sm:$0xff]
    %v1102 = vld [vmem:[#allocation7 + $0x248] sm:$0xff]
    %v1103 = vld [vmem:[#allocation7 + $0x250] sm:$0xff]
    %v1104 = vld [vmem:[#allocation7 + $0x258] sm:$0xff]
    %v1105 = vld [vmem:[#allocation7 + $0x260] sm:$0xff]
    %v1106 = vld [vmem:[#allocation7 + $0x268] sm:$0xff]
    %v1107 = vld [vmem:[#allocation7 + $0x270] sm:$0xff]
    %v1108 = vld [vmem:[#allocation7 + $0x278] sm:$0xff]
    %v1109 = vld [vmem:[#allocation7 + $0x280] sm:$0xff]
    %v1110 = vld [vmem:[#allocation7 + $0x288] sm:$0xff]
    %v1111 = vld [vmem:[#allocation7 + $0x290] sm:$0xff]
    %v1112 = vld [vmem:[#allocation7 + $0x298] sm:$0xff]
    %v1113 = vld [vmem:[#allocation7 + $0x2a0] sm:$0xff]
    %v1114 = vld [vmem:[#allocation7 + $0x2a8] sm:$0xff]
    %v1115 = vld [vmem:[#allocation7 + $0x2b0] sm:$0xff]
    %v1116 = vld [vmem:[#allocation7 + $0x2b8] sm:$0xff]
    %v1117 = vld [vmem:[#allocation7 + $0x2c0] sm:$0xff]
    %v1118 = vld [vmem:[#allocation7 + $0x2c8] sm:$0xff]
    %v1119 = vld [vmem:[#allocation7 + $0x2d0] sm:$0xff]
    %v1120 = vld [vmem:[#allocation7 + $0x2d8] sm:$0xff]
    %v1121 = vld [vmem:[#allocation7 + $0x2e0] sm:$0xff]
    %v1122 = vld [vmem:[#allocation7 + $0x2e8] sm:$0xff]
    %v1123 = vld [vmem:[#allocation7 + $0x2f0] sm:$0xff]
    %v1124 = vld [vmem:[#allocation7 + $0x2f8] sm:$0xff]
    %v1125 = vld [vmem:[#allocation7 + $0x300] sm:$0xff]
    %v1126 = vld [vmem:[#allocation7 + $0x308] sm:$0xff]
    %v1127 = vld [vmem:[#allocation7 + $0x310] sm:$0xff]
    %v1128 = vld [vmem:[#allocation7 + $0x318] sm:$0xff]
    %v1129 = vld [vmem:[#allocation7 + $0x320] sm:$0xff]
    %v1130 = vld [vmem:[#allocation7 + $0x328] sm:$0xff]
    %v1131 = vld [vmem:[#allocation7 + $0x330] sm:$0xff]
    %v1132 = vld [vmem:[#allocation7 + $0x338] sm:$0xff]
    %v1133 = vld [vmem:[#allocation7 + $0x340] sm:$0xff]
    %v1134 = vld [vmem:[#allocation7 + $0x348] sm:$0xff]
    %v1135 = vld [vmem:[#allocation7 + $0x350] sm:$0xff]
    %v1136 = vld [vmem:[#allocation7 + $0x358] sm:$0xff]
    %v1137 = vld [vmem:[#allocation7 + $0x360] sm:$0xff]
    %v1138 = vld [vmem:[#allocation7 + $0x368] sm:$0xff]
    %v1139 = vld [vmem:[#allocation7 + $0x370] sm:$0xff]
    %v1140 = vld [vmem:[#allocation7 + $0x378] sm:$0xff]
    %v1141 = vld [vmem:[#allocation7 + $0x380] sm:$0xff]
    %v1142 = vld [vmem:[#allocation7 + $0x388] sm:$0xff]
    %v1143 = vld [vmem:[#allocation7 + $0x390] sm:$0xff]
    %v1144 = vld [vmem:[#allocation7 + $0x398] sm:$0xff]
    %v1145 = vld [vmem:[#allocation7 + $0x3a0] sm:$0xff]
    %v1146 = vld [vmem:[#allocation7 + $0x3a8] sm:$0xff]
    %v1147 = vld [vmem:[#allocation7 + $0x3b0] sm:$0xff]
    %v1148 = vld [vmem:[#allocation7 + $0x3b8] sm:$0xff]
    %v1149 = vld [vmem:[#allocation7 + $0x3c0] sm:$0xff]
    %v1150 = vld [vmem:[#allocation7 + $0x3c8] sm:$0xff]
    %v1151 = vld [vmem:[#allocation7 + $0x3d0] sm:$0xff]
    %v1152 = vld [vmem:[#allocation7 + $0x3d8] sm:$0xff]
    %v1153 = vld [vmem:[#allocation7 + $0x3e0] sm:$0xff]
    %v1154 = vld [vmem:[#allocation7 + $0x3e8] sm:$0xff]
    %v1155 = vld [vmem:[#allocation7 + $0x3f0] sm:$0xff]
    %v1156 = vld [vmem:[#allocation7 + $0x3f8] sm:$0xff]
    %v1157 = vld [vmem:[#allocation7 + $0x400] sm:$0xff]
    %v1158 = vld [vmem:[#allocation7 + $0x408] sm:$0xff]
    %v1159 = vld [vmem:[#allocation7 + $0x410] sm:$0xff]
    %v1160 = vld [vmem:[#allocation7 + $0x418] sm:$0xff]
    %v1161 = vld [vmem:[#allocation7 + $0x420] sm:$0xff]
    %v1162 = vld [vmem:[#allocation7 + $0x428] sm:$0xff]
    %v1163 = vld [vmem:[#allocation7 + $0x430] sm:$0xff]
    %v1164 = vld [vmem:[#allocation7 + $0x438] sm:$0xff]
    %v1165 = vld [vmem:[#allocation7 + $0x440] sm:$0xff]
    %v1166 = vld [vmem:[#allocation7 + $0x448] sm:$0xff]
    %v1167 = vld [vmem:[#allocation7 + $0x450] sm:$0xff]
    %v1168 = vld [vmem:[#allocation7 + $0x458] sm:$0xff]
    %v1169 = vld [vmem:[#allocation7 + $0x460] sm:$0xff]
    %v1170 = vld [vmem:[#allocation7 + $0x468] sm:$0xff]
    %v1171 = vld [vmem:[#allocation7 + $0x470] sm:$0xff]
    %v1172 = vld [vmem:[#allocation7 + $0x478] sm:$0xff]
    %v1173 = vld [vmem:[#allocation7 + $0x480] sm:$0xff]
    %v1174 = vld [vmem:[#allocation7 + $0x488] sm:$0xff]
    %v1175 = vld [vmem:[#allocation7 + $0x490] sm:$0xff]
    %v1176 = vld [vmem:[#allocation7 + $0x498] sm:$0xff]
    %v1177 = vld [vmem:[#allocation7 + $0x4a0] sm:$0xff]
    %v1178 = vld [vmem:[#allocation7 + $0x4a8] sm:$0xff]
    %v1179 = vld [vmem:[#allocation7 + $0x4b0] sm:$0xff]
    %v1180 = vld [vmem:[#allocation7 + $0x4b8] sm:$0xff]
    %v1181 = vld [vmem:[#allocation7 + $0x4c0] sm:$0xff]
    %v1182 = vld [vmem:[#allocation7 + $0x4c8] sm:$0xff]
    %v1183 = vld [vmem:[#allocation7 + $0x4d0] sm:$0xff]
    %v1184 = vld [vmem:[#allocation7 + $0x4d8] sm:$0xff]
    %v1185 = vld [vmem:[#allocation7 + $0x4e0] sm:$0xff]
    %v1186 = vld [vmem:[#allocation7 + $0x4e8] sm:$0xff]
    %v1187 = vld [vmem:[#allocation7 + $0x4f0] sm:$0xff]
    %v1188 = vld [vmem:[#allocation7 + $0x4f8] sm:$0xff]
    %v1189 = vld [vmem:[#allocation7 + $0x500] sm:$0xff]
    %v1190 = vld [vmem:[#allocation7 + $0x508] sm:$0xff]
    %v1191 = vld [vmem:[#allocation7 + $0x510] sm:$0xff]
    %v1192 = vld [vmem:[#allocation7 + $0x518] sm:$0xff]
    %v1193 = vld [vmem:[#allocation7 + $0x520] sm:$0xff]
    %v1194 = vld [vmem:[#allocation7 + $0x528] sm:$0xff]
    %v1195 = vld [vmem:[#allocation7 + $0x530] sm:$0xff]
    %v1196 = vld [vmem:[#allocation7 + $0x538] sm:$0xff]
    %v1197 = vld [vmem:[#allocation7 + $0x540] sm:$0xff]
    %v1198 = vld [vmem:[#allocation7 + $0x548] sm:$0xff]
    %v1199 = vld [vmem:[#allocation7 + $0x550] sm:$0xff]
    %v1200 = vld [vmem:[#allocation7 + $0x558] sm:$0xff]
    %v1201 = vld [vmem:[#allocation7 + $0x560] sm:$0xff]
    %v1202 = vld [vmem:[#allocation7 + $0x568] sm:$0xff]
    %v1203 = vld [vmem:[#allocation7 + $0x570] sm:$0xff]
    %v1204 = vld [vmem:[#allocation7 + $0x578] sm:$0xff]
    %v1205 = vld [vmem:[#allocation7 + $0x580] sm:$0xff]
    %v1206 = vld [vmem:[#allocation7 + $0x588] sm:$0xff]
    %v1207 = vld [vmem:[#allocation7 + $0x590] sm:$0xff]
    %v1208 = vld [vmem:[#allocation7 + $0x598] sm:$0xff]
    %v1209 = vld [vmem:[#allocation7 + $0x5a0] sm:$0xff]
    %v1210 = vld [vmem:[#allocation7 + $0x5a8] sm:$0xff]
    %v1211 = vld [vmem:[#allocation7 + $0x5b0] sm:$0xff]
    %v1212 = vld [vmem:[#allocation7 + $0x5b8] sm:$0xff]
    %v1213 = vld [vmem:[#allocation7 + $0x5c0] sm:$0xff]
    %v1214 = vld [vmem:[#allocation7 + $0x5c8] sm:$0xff]
    %v1215 = vld [vmem:[#allocation7 + $0x5d0] sm:$0xff]
    %v1216 = vld [vmem:[#allocation7 + $0x5d8] sm:$0xff]
    %v1217 = vld [vmem:[#allocation7 + $0x5e0] sm:$0xff]
    %v1218 = vld [vmem:[#allocation7 + $0x5e8] sm:$0xff]
    %v1219 = vld [vmem:[#allocation7 + $0x5f0] sm:$0xff]
    %v1220 = vld [vmem:[#allocation7 + $0x5f8] sm:$0xff]
    %v1221 = vld [vmem:[#allocation7 + $0x600] sm:$0xff]
    %v1222 = vld [vmem:[#allocation7 + $0x608] sm:$0xff]
    %v1223 = vld [vmem:[#allocation7 + $0x610] sm:$0xff]
    %v1224 = vld [vmem:[#allocation7 + $0x618] sm:$0xff]
    %v1225 = vld [vmem:[#allocation7 + $0x620] sm:$0xff]
    %v1226 = vld [vmem:[#allocation7 + $0x628] sm:$0xff]
    %v1227 = vld [vmem:[#allocation7 + $0x630] sm:$0xff]
    %v1228 = vld [vmem:[#allocation7 + $0x638] sm:$0xff]
    %v1229 = vld [vmem:[#allocation7 + $0x640] sm:$0xff]
    %v1230 = vld [vmem:[#allocation7 + $0x648] sm:$0xff]
    %v1231 = vld [vmem:[#allocation7 + $0x650] sm:$0xff]
    %v1232 = vld [vmem:[#allocation7 + $0x658] sm:$0xff]
    %v1233 = vld [vmem:[#allocation7 + $0x660] sm:$0xff]
    %v1234 = vld [vmem:[#allocation7 + $0x668] sm:$0xff]
    %v1235 = vld [vmem:[#allocation7 + $0x670] sm:$0xff]
    %v1236 = vld [vmem:[#allocation7 + $0x678] sm:$0xff]
    %v1237 = vld [vmem:[#allocation7 + $0x680] sm:$0xff]
    %v1238 = vld [vmem:[#allocation7 + $0x688] sm:$0xff]
    %v1239 = vld [vmem:[#allocation7 + $0x690] sm:$0xff]
    %v1240 = vld [vmem:[#allocation7 + $0x698] sm:$0xff]
    %v1241 = vld [vmem:[#allocation7 + $0x6a0] sm:$0xff]
    %v1242 = vld [vmem:[#allocation7 + $0x6a8] sm:$0xff]
    %v1243 = vld [vmem:[#allocation7 + $0x6b0] sm:$0xff]
    %v1244 = vld [vmem:[#allocation7 + $0x6b8] sm:$0xff]
    %v1245 = vld [vmem:[#allocation7 + $0x6c0] sm:$0xff]
    %v1246 = vld [vmem:[#allocation7 + $0x6c8] sm:$0xff]
    %v1247 = vld [vmem:[#allocation7 + $0x6d0] sm:$0xff]
    %v1248 = vld [vmem:[#allocation7 + $0x6d8] sm:$0xff]
    %v1249 = vld [vmem:[#allocation7 + $0x6e0] sm:$0xff]
    %v1250 = vld [vmem:[#allocation7 + $0x6e8] sm:$0xff]
    %v1251 = vld [vmem:[#allocation7 + $0x6f0] sm:$0xff]
    %v1252 = vld [vmem:[#allocation7 + $0x6f8] sm:$0xff]
    %v1253 = vld [vmem:[#allocation7 + $0x700] sm:$0xff]
    %v1254 = vld [vmem:[#allocation7 + $0x708] sm:$0xff]
    %v1255 = vld [vmem:[#allocation7 + $0x710] sm:$0xff]
    %v1256 = vld [vmem:[#allocation7 + $0x718] sm:$0xff]
    %v1257 = vld [vmem:[#allocation7 + $0x720] sm:$0xff]
    %v1258 = vld [vmem:[#allocation7 + $0x728] sm:$0xff]
    %v1259 = vld [vmem:[#allocation7 + $0x730] sm:$0xff]
    %v1260 = vld [vmem:[#allocation7 + $0x738] sm:$0xff]
    %v1261 = vld [vmem:[#allocation7 + $0x740] sm:$0xff]
    %v1262 = vld [vmem:[#allocation7 + $0x748] sm:$0xff]
    %v1263 = vld [vmem:[#allocation7 + $0x750] sm:$0xff]
    %v1264 = vld [vmem:[#allocation7 + $0x758] sm:$0xff]
    %v1265 = vld [vmem:[#allocation7 + $0x760] sm:$0xff]
    %v1266 = vld [vmem:[#allocation7 + $0x768] sm:$0xff]
    %v1267 = vld [vmem:[#allocation7 + $0x770] sm:$0xff]
    %v1268 = vld [vmem:[#allocation7 + $0x778] sm:$0xff]
    %v1269 = vld [vmem:[#allocation7 + $0x780] sm:$0xff]
    %v1270 = vld [vmem:[#allocation7 + $0x788] sm:$0xff]
    %v1271 = vld [vmem:[#allocation7 + $0x790] sm:$0xff]
    %v1272 = vld [vmem:[#allocation7 + $0x798] sm:$0xff]
    %v1273 = vld [vmem:[#allocation7 + $0x7a0] sm:$0xff]
    %v1274 = vld [vmem:[#allocation7 + $0x7a8] sm:$0xff]
    %v1275 = vld [vmem:[#allocation7 + $0x7b0] sm:$0xff]
    %v1276 = vld [vmem:[#allocation7 + $0x7b8] sm:$0xff]
    %v1277 = vld [vmem:[#allocation7 + $0x7c0] sm:$0xff]
    %v1278 = vld [vmem:[#allocation7 + $0x7c8] sm:$0xff]
    %v1279 = vld [vmem:[#allocation7 + $0x7d0] sm:$0xff]
    %v1280 = vld [vmem:[#allocation7 + $0x7d8] sm:$0xff]
    %v1281 = vld [vmem:[#allocation7 + $0x7e0] sm:$0xff]
    %v1282 = vld [vmem:[#allocation7 + $0x7e8] sm:$0xff]
    %v1283 = vld [vmem:[#allocation7 + $0x7f0] sm:$0xff]
    %v1284 = vld [vmem:[#allocation7 + $0x7f8] sm:$0xff]
    %v1285 = vld [vmem:[#allocation7 + $0x800] sm:$0xff]
    %v1286 = vld [vmem:[#allocation7 + $0x808] sm:$0xff]
    %v1287 = vld [vmem:[#allocation7 + $0x810] sm:$0xff]
    %v1288 = vld [vmem:[#allocation7 + $0x818] sm:$0xff]
    %v1289 = vld [vmem:[#allocation7 + $0x820] sm:$0xff]
    %v1290 = vld [vmem:[#allocation7 + $0x828] sm:$0xff]
    %v1291 = vld [vmem:[#allocation7 + $0x830] sm:$0xff]
    %v1292 = vld [vmem:[#allocation7 + $0x838] sm:$0xff]
    %v1293 = vld [vmem:[#allocation7 + $0x840] sm:$0xff]
    %v1294 = vld [vmem:[#allocation7 + $0x848] sm:$0xff]
    %v1295 = vld [vmem:[#allocation7 + $0x850] sm:$0xff]
    %v1296 = vld [vmem:[#allocation7 + $0x858] sm:$0xff]
    %v1297 = vld [vmem:[#allocation7 + $0x860] sm:$0xff]
    %v1298 = vld [vmem:[#allocation7 + $0x868] sm:$0xff]
    %v1299 = vld [vmem:[#allocation7 + $0x870] sm:$0xff]
    %v1300 = vld [vmem:[#allocation7 + $0x878] sm:$0xff]
    %v1301 = vld [vmem:[#allocation7 + $0x880] sm:$0xff]
    %v1302 = vld [vmem:[#allocation7 + $0x888] sm:$0xff]
    %v1303 = vld [vmem:[#allocation7 + $0x890] sm:$0xff]
    %v1304 = vld [vmem:[#allocation7 + $0x898] sm:$0xff]
    %v1305 = vld [vmem:[#allocation7 + $0x8a0] sm:$0xff]
    %v1306 = vld [vmem:[#allocation7 + $0x8a8] sm:$0xff]
    %v1307 = vld [vmem:[#allocation7 + $0x8b0] sm:$0xff]
    %v1308 = vld [vmem:[#allocation7 + $0x8b8] sm:$0xff]
    %v1309 = vld [vmem:[#allocation7 + $0x8c0] sm:$0xff]
    %v1310 = vld [vmem:[#allocation7 + $0x8c8] sm:$0xff]
    %v1311 = vld [vmem:[#allocation7 + $0x8d0] sm:$0xff]
    %v1312 = vld [vmem:[#allocation7 + $0x8d8] sm:$0xff]
    %v1313 = vld [vmem:[#allocation7 + $0x8e0] sm:$0xff]
    %v1314 = vld [vmem:[#allocation7 + $0x8e8] sm:$0xff]
    %v1315 = vld [vmem:[#allocation7 + $0x8f0] sm:$0xff]
    %v1316 = vld [vmem:[#allocation7 + $0x8f8] sm:$0xff]
    %v1317 = vld [vmem:[#allocation7 + $0x900] sm:$0xff]
    %v1318 = vld [vmem:[#allocation7 + $0x908] sm:$0xff]
    %v1319 = vld [vmem:[#allocation7 + $0x910] sm:$0xff]
    %v1320 = vld [vmem:[#allocation7 + $0x918] sm:$0xff]
    %v1321 = vld [vmem:[#allocation7 + $0x920] sm:$0xff]
    %v1322 = vld [vmem:[#allocation7 + $0x928] sm:$0xff]
    %v1323 = vld [vmem:[#allocation7 + $0x930] sm:$0xff]
    %v1324 = vld [vmem:[#allocation7 + $0x938] sm:$0xff]
    %v1325 = vld [vmem:[#allocation7 + $0x940] sm:$0xff]
    %v1326 = vld [vmem:[#allocation7 + $0x948] sm:$0xff]
    %v1327 = vld [vmem:[#allocation7 + $0x950] sm:$0xff]
    %v1328 = vld [vmem:[#allocation7 + $0x958] sm:$0xff]
    %v1329 = vld [vmem:[#allocation7 + $0x960] sm:$0xff]
    %v1330 = vld [vmem:[#allocation7 + $0x968] sm:$0xff]
    %v1331 = vld [vmem:[#allocation7 + $0x970] sm:$0xff]
    %v1332 = vld [vmem:[#allocation7 + $0x978] sm:$0xff]
    %v1333 = vld [vmem:[#allocation7 + $0x980] sm:$0xff]
    %v1334 = vld [vmem:[#allocation7 + $0x988] sm:$0xff]
    %v1335 = vld [vmem:[#allocation7 + $0x990] sm:$0xff]
    %v1336 = vld [vmem:[#allocation7 + $0x998] sm:$0xff]
    %v1337 = vld [vmem:[#allocation7 + $0x9a0] sm:$0xff]
    %v1338 = vld [vmem:[#allocation7 + $0x9a8] sm:$0xff]
    %v1339 = vld [vmem:[#allocation7 + $0x9b0] sm:$0xff]
    %v1340 = vld [vmem:[#allocation7 + $0x9b8] sm:$0xff]
    %v1341 = vld [vmem:[#allocation7 + $0x9c0] sm:$0xff]
    %v1342 = vld [vmem:[#allocation7 + $0x9c8] sm:$0xff]
    %v1343 = vld [vmem:[#allocation7 + $0x9d0] sm:$0xff]
    %v1344 = vld [vmem:[#allocation7 + $0x9d8] sm:$0xff]
    %v1345 = vld [vmem:[#allocation7 + $0x9e0] sm:$0xff]
    %v1346 = vld [vmem:[#allocation7 + $0x9e8] sm:$0xff]
    %v1347 = vld [vmem:[#allocation7 + $0x9f0] sm:$0xff]
    %v1348 = vld [vmem:[#allocation7 + $0x9f8] sm:$0xff]
    %v1349 = vld [vmem:[#allocation8] sm:$0x3]
    %v1351 = vlaneseq
    %v1352 = vshrl.u32 %v1351, 7
    %v1353 = vsub.s32 0, %v1352
    %v1354 = vrot.slane %v1349, %v1353
    %v1355 = vlaneseq
    %v1356 = vshrl.u32 %v1355, 7
    %v1357 = vsub.s32 1, %v1356
    %v1358 = vrot.slane %v1349, %v1357
    %1361 = vmatprep.subr.mxu0 %v1030
    %1362 = vmatpush1.msra.mxu0 %v1029
    %1363 = vmatprep.subr.mxu0 %v1032
    %1364 = vmatpush1.msra.mxu0 %v1031
    %1365 = vmatprep.subr.mxu0 %v1034
    %1366 = vmatpush1.msra.mxu0 %v1033
    %1367 = vmatprep.subr.mxu0 %v1036
    %1368 = vmatpush1.msra.mxu0 %v1035
    %1369 = vmatprep.subr.mxu0 %v1038
    %1370 = vmatpush1.msra.mxu0 %v1037
    %1371 = vmatprep.subr.mxu0 %v1040
    %1372 = vmatpush1.msra.mxu0 %v1039
    %1373 = vmatprep.subr.mxu0 %v1042
    %1374 = vmatpush1.msra.mxu0 %v1041
    %1375 = vmatprep.subr.mxu0 %v1044
    %1376 = vmatpush1.msra.mxu0 %v1043
    %1377 = vmatprep.subr.mxu0 %v1046
    %1378 = vmatpush1.msra.mxu0 %v1045
    %1379 = vmatprep.subr.mxu0 %v1048
    %1380 = vmatpush1.msra.mxu0 %v1047
    %1381 = vmatprep.subr.mxu0 %v1050
    %1382 = vmatpush1.msra.mxu0 %v1049
    %1383 = vmatprep.subr.mxu0 %v1052
    %1384 = vmatpush1.msra.mxu0 %v1051
    %1385 = vmatprep.subr.mxu0 %v1054
    %1386 = vmatpush1.msra.mxu0 %v1053
    %1387 = vmatprep.subr.mxu0 %v1056
    %1388 = vmatpush1.msra.mxu0 %v1055
    %1389 = vmatprep.subr.mxu0 %v1058
    %1390 = vmatpush1.msra.mxu0 %v1057
    %1391 = vmatprep.subr.mxu0 %v1060
    %1392 = vmatpush1.msra.mxu0 %v1059
    %1393 = vmatprep.subr.mxu0 %v1062
    %1394 = vmatpush1.msra.mxu0 %v1061
    %1395 = vmatprep.subr.mxu0 %v1064
    %1396 = vmatpush1.msra.mxu0 %v1063
    %1397 = vmatprep.subr.mxu0 %v1066
    %1398 = vmatpush1.msra.mxu0 %v1065
    %1399 = vmatprep.subr.mxu0 %v1068
    %1400 = vmatpush1.msra.mxu0 %v1067
    %1401 = vmatprep.subr.mxu0 %v1070
    %1402 = vmatpush1.msra.mxu0 %v1069
    %1403 = vmatprep.subr.mxu0 %v1072
    %1404 = vmatpush1.msra.mxu0 %v1071
    %1405 = vmatprep.subr.mxu0 %v1074
    %1406 = vmatpush1.msra.mxu0 %v1073
    %1407 = vmatprep.subr.mxu0 %v1076
    %1408 = vmatpush1.msra.mxu0 %v1075
    %1409 = vmatprep.subr.mxu0 %v1078
    %1410 = vmatpush1.msra.mxu0 %v1077
    %1411 = vmatprep.subr.mxu0 %v1080
    %1412 = vmatpush1.msra.mxu0 %v1079
    %1413 = vmatprep.subr.mxu0 %v1082
    %1414 = vmatpush1.msra.mxu0 %v1081
    %1415 = vmatprep.subr.mxu0 %v1084
    %1416 = vmatpush1.msra.mxu0 %v1083
    %1417 = vmatprep.subr.mxu0 %v1086
    %1418 = vmatpush1.msra.mxu0 %v1085
    %1419 = vmatprep.subr.mxu0 %v1088
    %1420 = vmatpush1.msra.mxu0 %v1087
    %1421 = vmatprep.subr.mxu0 %v1090
    %1422 = vmatpush1.msra.mxu0 %v1089
    %1423 = vmatprep.subr.mxu0 %v1092
    %1424 = vmatpush1.msra.mxu0 %v1091
    %1425 = vmatprep.mubr.f32.mxu0 %v921
    %1426 = vmatmul.mubr.f32.gmra.mrb[0].mxu0 %v920
    %v1427 = vpop.f32.mrb[0].mxu0
    %v1428 = vadd.f32 %v1354, %v1427
    %v1429 = vpop.f32.mrb[0].mxu0
    %v1430 = vadd.f32 %v1358, %v1429
    %1431 = vmatprep.mubr.f32.mxu0 %v923
    %1432 = vmatmul.mubr.f32.gmra.mrb[0].mxu0 %v922
    %v1433 = vpop.f32.mrb[0].mxu0
    %v1434 = vadd.f32 %v1354, %v1433
    %v1435 = vpop.f32.mrb[0].mxu0
    %v1436 = vadd.f32 %v1358, %v1435
    %1437 = vmatprep.mubr.f32.mxu0 %v927
    %1438 = vmatmul.mubr.f32.gmra.mrb[0].mxu0 %v926
    %v1439 = vpop.f32.mrb[0].mxu0
    %v1440 = vadd.f32 %v1354, %v1439
    %v1441 = vpop.f32.mrb[0].mxu0
    %v1442 = vadd.f32 %v1358, %v1441
    %1443 = vmatprep.mubr.f32.mxu0 %v929
    %1444 = vmatmul.mubr.f32.gmra.mrb[0].mxu0 %v928
    %v1445 = vpop.f32.mrb[0].mxu0
    %v1446 = vadd.f32 %v1354, %v1445
    %v1447 = vpop.f32.mrb[0].mxu0
    %v1448 = vadd.f32 %v1358, %v1447
    %1449 = vdwg.mxu0
    %1450 = vmatprep.subr.mxu0 %v1094
    %1451 = vmatpush1.msra.mxu0 %v1093
    %1452 = vmatprep.subr.mxu0 %v1096
    %1453 = vmatpush1.msra.mxu0 %v1095
    %1454 = vmatprep.subr.mxu0 %v1098
    %1455 = vmatpush1.msra.mxu0 %v1097
    %1456 = vmatprep.subr.mxu0 %v1100
    %1457 = vmatpush1.msra.mxu0 %v1099
    %1458 = vmatprep.subr.mxu0 %v1102
    %1459 = vmatpush1.msra.mxu0 %v1101
    %1460 = vmatprep.subr.mxu0 %v1104
    %1461 = vmatpush1.msra.mxu0 %v1103
    %1462 = vmatprep.subr.mxu0 %v1106
    %1463 = vmatpush1.msra.mxu0 %v1105
    %1464 = vmatprep.subr.mxu0 %v1108
    %1465 = vmatpush1.msra.mxu0 %v1107
    %1466 = vmatprep.subr.mxu0 %v1110
    %1467 = vmatpush1.msra.mxu0 %v1109
    %1468 = vmatprep.subr.mxu0 %v1112
    %1469 = vmatpush1.msra.mxu0 %v1111
    %1470 = vmatprep.subr.mxu0 %v1114
    %1471 = vmatpush1.msra.mxu0 %v1113
    %1472 = vmatprep.subr.mxu0 %v1116
    %1473 = vmatpush1.msra.mxu0 %v1115
    %1474 = vmatprep.subr.mxu0 %v1118
    %1475 = vmatpush1.msra.mxu0 %v1117
    %1476 = vmatprep.subr.mxu0 %v1120
    %1477 = vmatpush1.msra.mxu0 %v1119
    %1478 = vmatprep.subr.mxu0 %v1122
    %1479 = vmatpush1.msra.mxu0 %v1121
    %1480 = vmatprep.subr.mxu0 %v1124
    %1481 = vmatpush1.msra.mxu0 %v1123
    %1482 = vmatprep.subr.mxu0 %v1126
    %1483 = vmatpush1.msra.mxu0 %v1125
    %1484 = vmatprep.subr.mxu0 %v1128
    %1485 = vmatpush1.msra.mxu0 %v1127
    %1486 = vmatprep.subr.mxu0 %v1130
    %1487 = vmatpush1.msra.mxu0 %v1129
    %1488 = vmatprep.subr.mxu0 %v1132
    %1489 = vmatpush1.msra.mxu0 %v1131
    %1490 = vmatprep.subr.mxu0 %v1134
    %1491 = vmatpush1.msra.mxu0 %v1133
    %1492 = vmatprep.subr.mxu0 %v1136
    %1493 = vmatpush1.msra.mxu0 %v1135
    %1494 = vmatprep.subr.mxu0 %v1138
    %1495 = vmatpush1.msra.mxu0 %v1137
    %1496 = vmatprep.subr.mxu0 %v1140
    %1497 = vmatpush1.msra.mxu0 %v1139
    %1498 = vmatprep.subr.mxu0 %v1142
    %1499 = vmatpush1.msra.mxu0 %v1141
    %1500 = vmatprep.subr.mxu0 %v1144
    %1501 = vmatpush1.msra.mxu0 %v1143
    %1502 = vmatprep.subr.mxu0 %v1146
    %1503 = vmatpush1.msra.mxu0 %v1145
    %1504 = vmatprep.subr.mxu0 %v1148
    %1505 = vmatpush1.msra.mxu0 %v1147
    %1506 = vmatprep.subr.mxu0 %v1150
    %1507 = vmatpush1.msra.mxu0 %v1149
    %1508 = vmatprep.subr.mxu0 %v1152
    %1509 = vmatpush1.msra.mxu0 %v1151
    %1510 = vmatprep.subr.mxu0 %v1154
    %1511 = vmatpush1.msra.mxu0 %v1153
    %1512 = vmatprep.subr.mxu0 %v1156
    %1513 = vmatpush1.msra.mxu0 %v1155
    %1514 = vmatprep.mubr.f32.mxu0 %v949
    %1515 = vmatmul.mubr.f32.gmra.mrb[0].mxu0 %v946
    %v1516 = vpop.f32.mrb[0].mxu0
    %v1517 = vadd.f32 %v1428, %v1516
    %v1518 = vpop.f32.mrb[0].mxu0
    %v1519 = vadd.f32 %v1430, %v1518
    %1520 = vmatprep.mubr.f32.mxu0 %v953
    %1521 = vmatmul.mubr.f32.gmra.mrb[0].mxu0 %v951
    %v1522 = vpop.f32.mrb[0].mxu0
    %v1523 = vadd.f32 %v1434, %v1522
    %v1524 = vpop.f32.mrb[0].mxu0
    %v1525 = vadd.f32 %v1436, %v1524
    %1526 = vmatprep.mubr.f32.mxu0 %v959
    %1527 = vmatmul.mubr.f32.gmra.mrb[0].mxu0 %v956
    %v1528 = vpop.f32.mrb[0].mxu0
    %v1529 = vadd.f32 %v1440, %v1528
    %v1530 = vpop.f32.mrb[0].mxu0
    %v1531 = vadd.f32 %v1442, %v1530
    %1532 = vmatprep.mubr.f32.mxu0 %v963
    %1533 = vmatmul.mubr.f32.gmra.mrb[0].mxu0 %v961
    %v1534 = vpop.f32.mrb[0].mxu0
    %v1535 = vadd.f32 %v1446, %v1534
    %v1536 = vpop.f32.mrb[0].mxu0
    %v1537 = vadd.f32 %v1448, %v1536
    %1538 = vdwg.mxu0
    %1539 = vmatprep.subr.mxu0 %v1158
    %1540 = vmatpush1.msra.mxu0 %v1157
    %1541 = vmatprep.subr.mxu0 %v1160
    %1542 = vmatpush1.msra.mxu0 %v1159
    %1543 = vmatprep.subr.mxu0 %v1162
    %1544 = vmatpush1.msra.mxu0 %v1161
    %1545 = vmatprep.subr.mxu0 %v1164
    %1546 = vmatpush1.msra.mxu0 %v1163
    %1547 = vmatprep.subr.mxu0 %v1166
    %1548 = vmatpush1.msra.mxu0 %v1165
    %1549 = vmatprep.subr.mxu0 %v1168
    %1550 = vmatpush1.msra.mxu0 %v1167
    %1551 = vmatprep.subr.mxu0 %v1170
    %1552 = vmatpush1.msra.mxu0 %v1169
    %1553 = vmatprep.subr.mxu0 %v1172
    %1554 = vmatpush1.msra.mxu0 %v1171
    %1555 = vmatprep.subr.mxu0 %v1174
    %1556 = vmatpush1.msra.mxu0 %v1173
    %1557 = vmatprep.subr.mxu0 %v1176
    %1558 = vmatpush1.msra.mxu0 %v1175
    %1559 = vmatprep.subr.mxu0 %v1178
    %1560 = vmatpush1.msra.mxu0 %v1177
    %1561 = vmatprep.subr.mxu0 %v1180
    %1562 = vmatpush1.msra.mxu0 %v1179
    %1563 = vmatprep.subr.mxu0 %v1182
    %1564 = vmatpush1.msra.mxu0 %v1181
    %1565 = vmatprep.subr.mxu0 %v1184
    %1566 = vmatpush1.msra.mxu0 %v1183
    %1567 = vmatprep.subr.mxu0 %v1186
    %1568 = vmatpush1.msra.mxu0 %v1185
    %1569 = vmatprep.subr.mxu0 %v1188
    %1570 = vmatpush1.msra.mxu0 %v1187
    %1571 = vmatprep.subr.mxu0 %v1190
    %1572 = vmatpush1.msra.mxu0 %v1189
    %1573 = vmatprep.subr.mxu0 %v1192
    %1574 = vmatpush1.msra.mxu0 %v1191
    %1575 = vmatprep.subr.mxu0 %v1194
    %1576 = vmatpush1.msra.mxu0 %v1193
    %1577 = vmatprep.subr.mxu0 %v1196
    %1578 = vmatpush1.msra.mxu0 %v1195
    %1579 = vmatprep.subr.mxu0 %v1198
    %1580 = vmatpush1.msra.mxu0 %v1197
    %1581 = vmatprep.subr.mxu0 %v1200
    %1582 = vmatpush1.msra.mxu0 %v1199
    %1583 = vmatprep.subr.mxu0 %v1202
    %1584 = vmatpush1.msra.mxu0 %v1201
    %1585 = vmatprep.subr.mxu0 %v1204
    %1586 = vmatpush1.msra.mxu0 %v1203
    %1587 = vmatprep.subr.mxu0 %v1206
    %1588 = vmatpush1.msra.mxu0 %v1205
    %1589 = vmatprep.subr.mxu0 %v1208
    %1590 = vmatpush1.msra.mxu0 %v1207
    %1591 = vmatprep.subr.mxu0 %v1210
    %1592 = vmatpush1.msra.mxu0 %v1209
    %1593 = vmatprep.subr.mxu0 %v1212
    %1594 = vmatpush1.msra.mxu0 %v1211
    %1595 = vmatprep.subr.mxu0 %v1214
    %1596 = vmatpush1.msra.mxu0 %v1213
    %1597 = vmatprep.subr.mxu0 %v1216
    %1598 = vmatpush1.msra.mxu0 %v1215
    %1599 = vmatprep.subr.mxu0 %v1218
    %1600 = vmatpush1.msra.mxu0 %v1217
    %1601 = vmatprep.subr.mxu0 %v1220
    %1602 = vmatpush1.msra.mxu0 %v1219
    %1603 = vmatprep.mubr.f32.mxu0 %v977
    %1604 = vmatmul.mubr.f32.gmra.mrb[0].mxu0 %v974
    %v1605 = vpop.f32.mrb[0].mxu0
    %v1606 = vadd.f32 %v1517, %v1605
    %v1607 = vpop.f32.mrb[0].mxu0
    %v1608 = vadd.f32 %v1519, %v1607
    %1609 = vmatprep.mubr.f32.mxu0 %v981
    %1610 = vmatmul.mubr.f32.gmra.mrb[0].mxu0 %v979
    %v1611 = vpop.f32.mrb[0].mxu0
    %v1612 = vadd.f32 %v1523, %v1611
    %v1613 = vpop.f32.mrb[0].mxu0
    %v1614 = vadd.f32 %v1525, %v1613
    %1615 = vmatprep.mubr.f32.mxu0 %v987
    %1616 = vmatmul.mubr.f32.gmra.mrb[0].mxu0 %v984
    %v1617 = vpop.f32.mrb[0].mxu0
    %v1618 = vadd.f32 %v1529, %v1617
    %v1619 = vpop.f32.mrb[0].mxu0
    %v1620 = vadd.f32 %v1531, %v1619
    %1621 = vmatprep.mubr.f32.mxu0 %v991
    %1622 = vmatmul.mubr.f32.gmra.mrb[0].mxu0 %v989
    %v1623 = vpop.f32.mrb[0].mxu0
    %v1624 = vadd.f32 %v1535, %v1623
    %v1625 = vpop.f32.mrb[0].mxu0
    %v1626 = vadd.f32 %v1537, %v1625
    %1627 = vdwg.mxu0
    %1628 = vmatprep.subr.mxu0 %v1222
    %1629 = vmatpush1.msra.mxu0 %v1221
    %1630 = vmatprep.subr.mxu0 %v1224
    %1631 = vmatpush1.msra.mxu0 %v1223
    %1632 = vmatprep.subr.mxu0 %v1226
    %1633 = vmatpush1.msra.mxu0 %v1225
    %1634 = vmatprep.subr.mxu0 %v1228
    %1635 = vmatpush1.msra.mxu0 %v1227
    %1636 = vmatprep.subr.mxu0 %v1230
    %1637 = vmatpush1.msra.mxu0 %v1229
    %1638 = vmatprep.subr.mxu0 %v1232
    %1639 = vmatpush1.msra.mxu0 %v1231
    %1640 = vmatprep.subr.mxu0 %v1234
    %1641 = vmatpush1.msra.mxu0 %v1233
    %1642 = vmatprep.subr.mxu0 %v1236
    %1643 = vmatpush1.msra.mxu0 %v1235
    %1644 = vmatprep.subr.mxu0 %v1238
    %1645 = vmatpush1.msra.mxu0 %v1237
    %1646 = vmatprep.subr.mxu0 %v1240
    %1647 = vmatpush1.msra.mxu0 %v1239
    %1648 = vmatprep.subr.mxu0 %v1242
    %1649 = vmatpush1.msra.mxu0 %v1241
    %1650 = vmatprep.subr.mxu0 %v1244
    %1651 = vmatpush1.msra.mxu0 %v1243
    %1652 = vmatprep.subr.mxu0 %v1246
    %1653 = vmatpush1.msra.mxu0 %v1245
    %1654 = vmatprep.subr.mxu0 %v1248
    %1655 = vmatpush1.msra.mxu0 %v1247
    %1656 = vmatprep.subr.mxu0 %v1250
    %1657 = vmatpush1.msra.mxu0 %v1249
    %1658 = vmatprep.subr.mxu0 %v1252
    %1659 = vmatpush1.msra.mxu0 %v1251
    %1660 = vmatprep.subr.mxu0 %v1254
    %1661 = vmatpush1.msra.mxu0 %v1253
    %1662 = vmatprep.subr.mxu0 %v1256
    %1663 = vmatpush1.msra.mxu0 %v1255
    %1664 = vmatprep.subr.mxu0 %v1258
    %1665 = vmatpush1.msra.mxu0 %v1257
    %1666 = vmatprep.subr.mxu0 %v1260
    %1667 = vmatpush1.msra.mxu0 %v1259
    %1668 = vmatprep.subr.mxu0 %v1262
    %1669 = vmatpush1.msra.mxu0 %v1261
    %1670 = vmatprep.subr.mxu0 %v1264
    %1671 = vmatpush1.msra.mxu0 %v1263
    %1672 = vmatprep.subr.mxu0 %v1266
    %1673 = vmatpush1.msra.mxu0 %v1265
    %1674 = vmatprep.subr.mxu0 %v1268
    %1675 = vmatpush1.msra.mxu0 %v1267
    %1676 = vmatprep.subr.mxu0 %v1270
    %1677 = vmatpush1.msra.mxu0 %v1269
    %1678 = vmatprep.subr.mxu0 %v1272
    %1679 = vmatpush1.msra.mxu0 %v1271
    %1680 = vmatprep.subr.mxu0 %v1274
    %1681 = vmatpush1.msra.mxu0 %v1273
    %1682 = vmatprep.subr.mxu0 %v1276
    %1683 = vmatpush1.msra.mxu0 %v1275
    %1684 = vmatprep.subr.mxu0 %v1278
    %1685 = vmatpush1.msra.mxu0 %v1277
    %1686 = vmatprep.subr.mxu0 %v1280
    %1687 = vmatpush1.msra.mxu0 %v1279
    %1688 = vmatprep.subr.mxu0 %v1282
    %1689 = vmatpush1.msra.mxu0 %v1281
    %1690 = vmatprep.subr.mxu0 %v1284
    %1691 = vmatpush1.msra.mxu0 %v1283
    %1692 = vmatprep.mubr.f32.mxu0 %v1006
    %1693 = vmatmul.mubr.f32.gmra.mrb[0].mxu0 %v1003
    %v1694 = vpop.f32.mrb[0].mxu0
    %v1695 = vadd.f32 %v1606, %v1694
    %v1696 = vpop.f32.mrb[0].mxu0
    %v1697 = vadd.f32 %v1608, %v1696
    %1698 = vmatprep.mubr.f32.mxu0 %v1010
    %1699 = vmatmul.mubr.f32.gmra.mrb[0].mxu0 %v1008
    %v1700 = vpop.f32.mrb[0].mxu0
    %v1701 = vadd.f32 %v1612, %v1700
    %v1702 = vpop.f32.mrb[0].mxu0
    %v1703 = vadd.f32 %v1614, %v1702
    %1704 = vmatprep.mubr.f32.mxu0 %v1016
    %1705 = vmatmul.mubr.f32.gmra.mrb[0].mxu0 %v1013
    %v1706 = vpop.f32.mrb[0].mxu0
    %v1707 = vadd.f32 %v1618, %v1706
    %v1708 = vpop.f32.mrb[0].mxu0
    %v1709 = vadd.f32 %v1620, %v1708
    %1710 = vmatprep.mubr.f32.mxu0 %v1020
    %1711 = vmatmul.mubr.f32.gmra.mrb[0].mxu0 %v1018
    %v1712 = vpop.f32.mrb[0].mxu0
    %v1713 = vadd.f32 %v1624, %v1712
    %v1714 = vpop.f32.mrb[0].mxu0
    %v1715 = vadd.f32 %v1626, %v1714
    %1716 = vdwg.mxu0
    %1717 = vmatprep.subr.mxu0 %v1286
    %1718 = vmatpush1.msra.mxu0 %v1285
    %1719 = vmatprep.subr.mxu0 %v1288
    %1720 = vmatpush1.msra.mxu0 %v1287
    %1721 = vmatprep.subr.mxu0 %v1290
    %1722 = vmatpush1.msra.mxu0 %v1289
    %1723 = vmatprep.subr.mxu0 %v1292
    %1724 = vmatpush1.msra.mxu0 %v1291
    %1725 = vmatprep.subr.mxu0 %v1294
    %1726 = vmatpush1.msra.mxu0 %v1293
    %1727 = vmatprep.subr.mxu0 %v1296
    %1728 = vmatpush1.msra.mxu0 %v1295
    %1729 = vmatprep.subr.mxu0 %v1298
    %1730 = vmatpush1.msra.mxu0 %v1297
    %1731 = vmatprep.subr.mxu0 %v1300
    %1732 = vmatpush1.msra.mxu0 %v1299
    %1733 = vmatprep.subr.mxu0 %v1302
    %1734 = vmatpush1.msra.mxu0 %v1301
    %1735 = vmatprep.subr.mxu0 %v1304
    %1736 = vmatpush1.msra.mxu0 %v1303
    %1737 = vmatprep.subr.mxu0 %v1306
    %1738 = vmatpush1.msra.mxu0 %v1305
    %1739 = vmatprep.subr.mxu0 %v1308
    %1740 = vmatpush1.msra.mxu0 %v1307
    %1741 = vmatprep.subr.mxu0 %v1310
    %1742 = vmatpush1.msra.mxu0 %v1309
    %1743 = vmatprep.subr.mxu0 %v1312
    %1744 = vmatpush1.msra.mxu0 %v1311
    %1745 = vmatprep.subr.mxu0 %v1314
    %1746 = vmatpush1.msra.mxu0 %v1313
    %1747 = vmatprep.subr.mxu0 %v1316
    %1748 = vmatpush1.msra.mxu0 %v1315
    %1749 = vmatprep.subr.mxu0 %v1318
    %1750 = vmatpush1.msra.mxu0 %v1317
    %1751 = vmatprep.subr.mxu0 %v1320
    %1752 = vmatpush1.msra.mxu0 %v1319
    %1753 = vmatprep.subr.mxu0 %v1322
    %1754 = vmatpush1.msra.mxu0 %v1321
    %1755 = vmatprep.subr.mxu0 %v1324
    %1756 = vmatpush1.msra.mxu0 %v1323
    %1757 = vmatprep.subr.mxu0 %v1326
    %1758 = vmatpush1.msra.mxu0 %v1325
    %1759 = vmatprep.subr.mxu0 %v1328
    %1760 = vmatpush1.msra.mxu0 %v1327
    %1761 = vmatprep.subr.mxu0 %v1330
    %1762 = vmatpush1.msra.mxu0 %v1329
    %1763 = vmatprep.subr.mxu0 %v1332
    %1764 = vmatpush1.msra.mxu0 %v1331
    %1765 = vmatprep.subr.mxu0 %v1334
    %1766 = vmatpush1.msra.mxu0 %v1333
    %1767 = vmatprep.subr.mxu0 %v1336
    %1768 = vmatpush1.msra.mxu0 %v1335
    %1769 = vmatprep.subr.mxu0 %v1338
    %1770 = vmatpush1.msra.mxu0 %v1337
    %1771 = vmatprep.subr.mxu0 %v1340
    %1772 = vmatpush1.msra.mxu0 %v1339
    %1773 = vmatprep.subr.mxu0 %v1342
    %1774 = vmatpush1.msra.mxu0 %v1341
    %1775 = vmatprep.subr.mxu0 %v1344
    %1776 = vmatpush1.msra.mxu0 %v1343
    %1777 = vmatprep.subr.mxu0 %v1346
    %1778 = vmatpush1.msra.mxu0 %v1345
    %1779 = vmatprep.subr.mxu0 %v1348
    %1780 = vmatpush1.msra.mxu0 %v1347
    %1781 = vmatprep.mubr.f32.mxu0 %v923
    %1782 = vmatmul.mubr.f32.gmra.mrb[0].mxu0 %v922
    %v1783 = vpop.f32.mrb[0].mxu0
    %v1784 = vadd.f32 %v1695, %v1783
    %v1785 = vpop.f32.mrb[0].mxu0
    %v1786 = vadd.f32 %v1697, %v1785
    %1787 = vmatprep.mubr.f32.mxu0 %v925
    %1788 = vmatmul.mubr.f32.gmra.mrb[0].mxu0 %v924
    %v1789 = vpop.f32.mrb[0].mxu0
    %v1790 = vadd.f32 %v1701, %v1789
    %v1791 = vpop.f32.mrb[0].mxu0
    %v1792 = vadd.f32 %v1703, %v1791
    %1793 = vmatprep.mubr.f32.mxu0 %v929
    %1794 = vmatmul.mubr.f32.gmra.mrb[0].mxu0 %v928
    %v1795 = vpop.f32.mrb[0].mxu0
    %v1796 = vadd.f32 %v1707, %v1795
    %v1797 = vpop.f32.mrb[0].mxu0
    %v1798 = vadd.f32 %v1709, %v1797
    %1799 = vmatprep.mubr.f32.mxu0 %v931
    %1800 = vmatmul.mubr.f32.gmra.mrb[0].mxu0 %v930
    %v1801 = vpop.f32.mrb[0].mxu0
    %v1802 = vadd.f32 %v1713, %v1801
    %v1803 = vpop.f32.mrb[0].mxu0
    %v1804 = vadd.f32 %v1715, %v1803
    %1805 = vdwg.mxu0
    %v1814 = vrot.slane %v1784, 2
    %v1815 = vrot.slane %v1790, 2
    %v1816 = vsel %vm181, %v1814, %v1815
    %v1817 = vrot.slane %v1786, 2
    %v1818 = vrot.slane %v1792, 2
    %v1819 = vsel %vm181, %v1817, %v1818
    %v1820 = vrot.slane %v1796, 2
    %v1821 = vrot.slane %v1802, 2
    %v1822 = vsel %vm181, %v1820, %v1821
    %v1823 = vrot.slane %v1798, 2
    %v1824 = vrot.slane %v1804, 2
    %v1825 = vsel %vm181, %v1823, %v1824
    %v1834 = vmax.f32 %v1784, %v1816
    %v1835 = vmax.f32 %v1786, %v1819
    %v1836 = vmax.f32 %v1790, %v1815
    %v1837 = vmax.f32 %v1792, %v1818
    %v1838 = vmax.f32 %v1796, %v1822
    %v1839 = vmax.f32 %v1798, %v1825
    %v1840 = vmax.f32 %v1802, %v1821
    %v1841 = vmax.f32 %v1804, %v1824
    %1850 = vrot.lane.b32.xlu0 %v1834, 108
    %v1851 = vpop.permute.xlu0 %1850
    %1852 = vrot.lane.b32.xlu0 %v1835, 108
    %v1853 = vpop.permute.xlu0 %1852
    %1854 = vrot.lane.b32.xlu0 %v1836, 108
    %v1855 = vpop.permute.xlu0 %1854
    %1856 = vrot.lane.b32.xlu0 %v1837, 108
    %v1857 = vpop.permute.xlu0 %1856
    %1858 = vrot.lane.b32.xlu0 %v1838, 108
    %v1859 = vpop.permute.xlu0 %1858
    %1860 = vrot.lane.b32.xlu0 %v1839, 108
    %v1861 = vpop.permute.xlu0 %1860
    %1862 = vrot.lane.b32.xlu0 %v1840, 108
    %v1863 = vpop.permute.xlu0 %1862
    %1864 = vrot.lane.b32.xlu0 %v1841, 108
    %v1865 = vpop.permute.xlu0 %1864
    %vm1866 = vcmask 883712
    %v1867 = vsel %vm1866, %v1851, %v1853
    %v1868 = vsel %vm1866, %v1855, %v1857
    %v1869 = vsel %vm1866, %v1859, %v1861
    %v1870 = vsel %vm1866, %v1863, %v1865
    %v1883 = vsel %vm1866, %v1853, %v1851
    %v1884 = vsel %vm1866, %v1857, %v1855
    %v1885 = vsel %vm1866, %v1861, %v1859
    %v1886 = vsel %vm1866, %v1865, %v1863
    %v1887 = vmax.f32 %v1834, %v1867
    %v1888 = vmax.f32 %v1835, %v1883
    %v1889 = vmax.f32 %v1836, %v1868
    %v1890 = vmax.f32 %v1837, %v1884
    %v1891 = vmax.f32 %v1838, %v1869
    %v1892 = vmax.f32 %v1839, %v1885
    %v1893 = vmax.f32 %v1840, %v1870
    %v1894 = vmax.f32 %v1841, %v1886
    %v1895 = vmax.f32 %v1887, 0.0
    %v1896 = vmax.f32 %v1888, 0.0
    %v1897 = vmax.f32 %v1889, 0.0
    %v1898 = vmax.f32 %v1890, 0.0
    %v1899 = vmax.f32 %v1891, 0.0
    %v1900 = vmax.f32 %v1892, 0.0
    %v1901 = vmax.f32 %v1893, 0.0
    %v1902 = vmax.f32 %v1894, 0.0
    %v1903 = vld [vmem:[#allocation11] sm:$0x1]
    %v1904 = vld [vmem:[#allocation10] sm:$0xff]
    %v1905 = vld [vmem:[#allocation10 + $0x8] sm:$0xff]
    %v1906 = vld [vmem:[#allocation10 + $0x10] sm:$0xff]
    %v1907 = vld [vmem:[#allocation10 + $0x18] sm:$0xff]
    %v1908 = vld [vmem:[#allocation10 + $0x20] sm:$0xff]
    %v1909 = vld [vmem:[#allocation10 + $0x28] sm:$0xff]
    %v1910 = vld [vmem:[#allocation10 + $0x30] sm:$0xff]
    %v1911 = vld [vmem:[#allocation10 + $0x38] sm:$0xff]
    %v1912 = vld [vmem:[#allocation10 + $0x40] sm:$0xff]
    %v1913 = vld [vmem:[#allocation10 + $0x48] sm:$0xff]
    %v1914 = vld [vmem:[#allocation10 + $0x50] sm:$0xff]
    %v1915 = vld [vmem:[#allocation10 + $0x58] sm:$0xff]
    %v1916 = vld [vmem:[#allocation10 + $0x60] sm:$0xff]
    %v1917 = vld [vmem:[#allocation10 + $0x68] sm:$0xff]
    %v1918 = vld [vmem:[#allocation10 + $0x70] sm:$0xff]
    %v1919 = vld [vmem:[#allocation10 + $0x78] sm:$0xff]
    %v1920 = vld [vmem:[#allocation10 + $0x80] sm:$0xff]
    %v1921 = vld [vmem:[#allocation10 + $0x88] sm:$0xff]
    %v1922 = vld [vmem:[#allocation10 + $0x90] sm:$0xff]
    %v1923 = vld [vmem:[#allocation10 + $0x98] sm:$0xff]
    %v1924 = vld [vmem:[#allocation10 + $0xa0] sm:$0xff]
    %v1925 = vld [vmem:[#allocation10 + $0xa8] sm:$0xff]
    %v1926 = vld [vmem:[#allocation10 + $0xb0] sm:$0xff]
    %v1927 = vld [vmem:[#allocation10 + $0xb8] sm:$0xff]
    %v1928 = vld [vmem:[#allocation10 + $0xc0] sm:$0xff]
    %v1929 = vld [vmem:[#allocation10 + $0xc8] sm:$0xff]
    %v1930 = vld [vmem:[#allocation10 + $0xd0] sm:$0xff]
    %v1931 = vld [vmem:[#allocation10 + $0xd8] sm:$0xff]
    %v1932 = vld [vmem:[#allocation10 + $0xe0] sm:$0xff]
    %v1933 = vld [vmem:[#allocation10 + $0xe8] sm:$0xff]
    %v1934 = vld [vmem:[#allocation10 + $0xf0] sm:$0xff]
    %v1935 = vld [vmem:[#allocation10 + $0xf8] sm:$0xff]
    %v1940 = vrot.slane %v1899, 7
    %vm1941 = vcmask 1041409
    %v1942 = vsel %vm1941, %v1940, %v1895
    %v1943 = vrot.slane %v1900, 7
    %v1944 = vsel %vm1941, %v1943, %v1896
    %1947 = vmatprep.subr.mxu0 0.0
    %1948 = vmatpush1.msra.mxu0 %v1904
    %1949 = vmatprep.subr.mxu0 0.0
    %1950 = vmatpush1.msra.mxu0 %v1905
    %1951 = vmatprep.subr.mxu0 0.0
    %1952 = vmatpush1.msra.mxu0 %v1906
    %1953 = vmatprep.subr.mxu0 0.0
    %1954 = vmatpush1.msra.mxu0 %v1907
    %1955 = vmatprep.subr.mxu0 0.0
    %1956 = vmatpush1.msra.mxu0 %v1908
    %1957 = vmatprep.subr.mxu0 0.0
    %1958 = vmatpush1.msra.mxu0 %v1909
    %1959 = vmatprep.subr.mxu0 0.0
    %1960 = vmatpush1.msra.mxu0 %v1910
    %1961 = vmatprep.subr.mxu0 0.0
    %1962 = vmatpush1.msra.mxu0 %v1911
    %1963 = vmatprep.subr.mxu0 0.0
    %1964 = vmatpush1.msra.mxu0 %v1912
    %1965 = vmatprep.subr.mxu0 0.0
    %1966 = vmatpush1.msra.mxu0 %v1913
    %1967 = vmatprep.subr.mxu0 0.0
    %1968 = vmatpush1.msra.mxu0 %v1914
    %1969 = vmatprep.subr.mxu0 0.0
    %1970 = vmatpush1.msra.mxu0 %v1915
    %1971 = vmatprep.subr.mxu0 0.0
    %1972 = vmatpush1.msra.mxu0 %v1916
    %1973 = vmatprep.subr.mxu0 0.0
    %1974 = vmatpush1.msra.mxu0 %v1917
    %1975 = vmatprep.subr.mxu0 0.0
    %1976 = vmatpush1.msra.mxu0 %v1918
    %1977 = vmatprep.subr.mxu0 0.0
    %1978 = vmatpush1.msra.mxu0 %v1919
    %1979 = vmatprep.subr.mxu0 0.0
    %1980 = vmatpush1.msra.mxu0 %v1920
    %1981 = vmatprep.subr.mxu0 0.0
    %1982 = vmatpush1.msra.mxu0 %v1921
    %1983 = vmatprep.subr.mxu0 0.0
    %1984 = vmatpush1.msra.mxu0 %v1922
    %1985 = vmatprep.subr.mxu0 0.0
    %1986 = vmatpush1.msra.mxu0 %v1923
    %1987 = vmatprep.subr.mxu0 0.0
    %1988 = vmatpush1.msra.mxu0 %v1924
    %1989 = vmatprep.subr.mxu0 0.0
    %1990 = vmatpush1.msra.mxu0 %v1925
    %1991 = vmatprep.subr.mxu0 0.0
    %1992 = vmatpush1.msra.mxu0 %v1926
    %1993 = vmatprep.subr.mxu0 0.0
    %1994 = vmatpush1.msra.mxu0 %v1927
    %1995 = vmatprep.subr.mxu0 0.0
    %1996 = vmatpush1.msra.mxu0 %v1928
    %1997 = vmatprep.subr.mxu0 0.0
    %1998 = vmatpush1.msra.mxu0 %v1929
    %1999 = vmatprep.subr.mxu0 0.0
    %2000 = vmatpush1.msra.mxu0 %v1930
    %2001 = vmatprep.subr.mxu0 0.0
    %2002 = vmatpush1.msra.mxu0 %v1931
    %2003 = vmatprep.subr.mxu0 0.0
    %2004 = vmatpush1.msra.mxu0 %v1932
    %2005 = vmatprep.subr.mxu0 0.0
    %2006 = vmatpush1.msra.mxu0 %v1933
    %2007 = vmatprep.subr.mxu0 0.0
    %2008 = vmatpush1.msra.mxu0 %v1934
    %2009 = vmatprep.subr.mxu0 0.0
    %2010 = vmatpush1.msra.mxu0 %v1935
    %2011 = vmatprep.mubr.f32.mxu0 %v1944
    %2012 = vmatmul.mubr.f32.gmra.mrb[0].mxu0 %v1942
    %v2013 = vpop.f32.mrb[0].mxu0
    %v2014 = vadd.f32 0.0, %v2013
    %v2015 = vpop.f32.mrb[0].mxu0
    %2016 = vdwg.mxu0
    %v2018 = vlaneseq
    %v2019 = vshrl.u32 %v2018, 7
    %v2020 = vsub.s32 0, %v2019
    %v2021 = vrot.slane %v1903, %v2020
    %v2023 = vadd.f32 %v2021, %v2014
    %s2024 = scalar_lea.vmem [#allocation10], 256
    %v2025 = vld [vmem:[%s2024] sm:$0xff]
    %v2026 = vld [vmem:[%s2024 + $0x8] sm:$0xff]
    %v2027 = vld [vmem:[%s2024 + $0x10] sm:$0xff]
    %v2028 = vld [vmem:[%s2024 + $0x18] sm:$0xff]
    %v2029 = vld [vmem:[%s2024 + $0x20] sm:$0xff]
    %v2030 = vld [vmem:[%s2024 + $0x28] sm:$0xff]
    %v2031 = vld [vmem:[%s2024 + $0x30] sm:$0xff]
    %v2032 = vld [vmem:[%s2024 + $0x38] sm:$0xff]
    %v2033 = vld [vmem:[%s2024 + $0x40] sm:$0xff]
    %v2034 = vld [vmem:[%s2024 + $0x48] sm:$0xff]
    %v2035 = vld [vmem:[%s2024 + $0x50] sm:$0xff]
    %v2036 = vld [vmem:[%s2024 + $0x58] sm:$0xff]
    %v2037 = vld [vmem:[%s2024 + $0x60] sm:$0xff]
    %v2038 = vld [vmem:[%s2024 + $0x68] sm:$0xff]
    %v2039 = vld [vmem:[%s2024 + $0x70] sm:$0xff]
    %v2040 = vld [vmem:[%s2024 + $0x78] sm:$0xff]
    %v2041 = vld [vmem:[%s2024 + $0x80] sm:$0xff]
    %v2042 = vld [vmem:[%s2024 + $0x88] sm:$0xff]
    %v2043 = vld [vmem:[%s2024 + $0x90] sm:$0xff]
    %v2044 = vld [vmem:[%s2024 + $0x98] sm:$0xff]
    %v2045 = vld [vmem:[%s2024 + $0xa0] sm:$0xff]
    %v2046 = vld [vmem:[%s2024 + $0xa8] sm:$0xff]
    %v2047 = vld [vmem:[%s2024 + $0xb0] sm:$0xff]
    %v2048 = vld [vmem:[%s2024 + $0xb8] sm:$0xff]
    %v2049 = vld [vmem:[%s2024 + $0xc0] sm:$0xff]
    %v2050 = vld [vmem:[%s2024 + $0xc8] sm:$0xff]
    %v2051 = vld [vmem:[%s2024 + $0xd0] sm:$0xff]
    %v2052 = vld [vmem:[%s2024 + $0xd8] sm:$0xff]
    %v2053 = vld [vmem:[%s2024 + $0xe0] sm:$0xff]
    %v2054 = vld [vmem:[%s2024 + $0xe8] sm:$0xff]
    %v2055 = vld [vmem:[%s2024 + $0xf0] sm:$0xff]
    %v2056 = vld [vmem:[%s2024 + $0xf8] sm:$0xff]
    %v2057 = vrot.slane %v1895, 4
    %v2058 = vrot.slane %v1899, 3
    %v2059 = vsel %vm1941, %v2058, %v2057
    %v2060 = vrot.slane %v1896, 4
    %v2061 = vrot.slane %v1900, 3
    %v2062 = vsel %vm1941, %v2061, %v2060
    %2065 = vmatprep.subr.mxu0 0.0
    %2066 = vmatpush1.msra.mxu0 %v2025
    %2067 = vmatprep.subr.mxu0 0.0
    %2068 = vmatpush1.msra.mxu0 %v2026
    %2069 = vmatprep.subr.mxu0 0.0
    %2070 = vmatpush1.msra.mxu0 %v2027
    %2071 = vmatprep.subr.mxu0 0.0
    %2072 = vmatpush1.msra.mxu0 %v2028
    %2073 = vmatprep.subr.mxu0 0.0
    %2074 = vmatpush1.msra.mxu0 %v2029
    %2075 = vmatprep.subr.mxu0 0.0
    %2076 = vmatpush1.msra.mxu0 %v2030
    %2077 = vmatprep.subr.mxu0 0.0
    %2078 = vmatpush1.msra.mxu0 %v2031
    %2079 = vmatprep.subr.mxu0 0.0
    %2080 = vmatpush1.msra.mxu0 %v2032
    %2081 = vmatprep.subr.mxu0 0.0
    %2082 = vmatpush1.msra.mxu0 %v2033
    %2083 = vmatprep.subr.mxu0 0.0
    %2084 = vmatpush1.msra.mxu0 %v2034
    %2085 = vmatprep.subr.mxu0 0.0
    %2086 = vmatpush1.msra.mxu0 %v2035
    %2087 = vmatprep.subr.mxu0 0.0
    %2088 = vmatpush1.msra.mxu0 %v2036
    %2089 = vmatprep.subr.mxu0 0.0
    %2090 = vmatpush1.msra.mxu0 %v2037
    %2091 = vmatprep.subr.mxu0 0.0
    %2092 = vmatpush1.msra.mxu0 %v2038
    %2093 = vmatprep.subr.mxu0 0.0
    %2094 = vmatpush1.msra.mxu0 %v2039
    %2095 = vmatprep.subr.mxu0 0.0
    %2096 = vmatpush1.msra.mxu0 %v2040
    %2097 = vmatprep.subr.mxu0 0.0
    %2098 = vmatpush1.msra.mxu0 %v2041
    %2099 = vmatprep.subr.mxu0 0.0
    %2100 = vmatpush1.msra.mxu0 %v2042
    %2101 = vmatprep.subr.mxu0 0.0
    %2102 = vmatpush1.msra.mxu0 %v2043
    %2103 = vmatprep.subr.mxu0 0.0
    %2104 = vmatpush1.msra.mxu0 %v2044
    %2105 = vmatprep.subr.mxu0 0.0
    %2106 = vmatpush1.msra.mxu0 %v2045
    %2107 = vmatprep.subr.mxu0 0.0
    %2108 = vmatpush1.msra.mxu0 %v2046
    %2109 = vmatprep.subr.mxu0 0.0
    %2110 = vmatpush1.msra.mxu0 %v2047
    %2111 = vmatprep.subr.mxu0 0.0
    %2112 = vmatpush1.msra.mxu0 %v2048
    %2113 = vmatprep.subr.mxu0 0.0
    %2114 = vmatpush1.msra.mxu0 %v2049
    %2115 = vmatprep.subr.mxu0 0.0
    %2116 = vmatpush1.msra.mxu0 %v2050
    %2117 = vmatprep.subr.mxu0 0.0
    %2118 = vmatpush1.msra.mxu0 %v2051
    %2119 = vmatprep.subr.mxu0 0.0
    %2120 = vmatpush1.msra.mxu0 %v2052
    %2121 = vmatprep.subr.mxu0 0.0
    %2122 = vmatpush1.msra.mxu0 %v2053
    %2123 = vmatprep.subr.mxu0 0.0
    %2124 = vmatpush1.msra.mxu0 %v2054
    %2125 = vmatprep.subr.mxu0 0.0
    %2126 = vmatpush1.msra.mxu0 %v2055
    %2127 = vmatprep.subr.mxu0 0.0
    %2128 = vmatpush1.msra.mxu0 %v2056
    %2129 = vmatprep.mubr.f32.mxu0 %v2062
    %2130 = vmatmul.mubr.f32.gmra.mrb[0].mxu0 %v2059
    %v2131 = vpop.f32.mrb[0].mxu0
    %v2132 = vadd.f32 0.0, %v2131
    %v2133 = vpop.f32.mrb[0].mxu0
    %2134 = vdwg.mxu0
    %v2135 = vadd.f32 %v2023, %v2132
    %s2136 = scalar_lea.vmem [#allocation10], 512
    %v2137 = vld [vmem:[%s2136] sm:$0xff]
    %v2138 = vld [vmem:[%s2136 + $0x8] sm:$0xff]
    %v2139 = vld [vmem:[%s2136 + $0x10] sm:$0xff]
    %v2140 = vld [vmem:[%s2136 + $0x18] sm:$0xff]
    %v2141 = vld [vmem:[%s2136 + $0x20] sm:$0xff]
    %v2142 = vld [vmem:[%s2136 + $0x28] sm:$0xff]
    %v2143 = vld [vmem:[%s2136 + $0x30] sm:$0xff]
    %v2144 = vld [vmem:[%s2136 + $0x38] sm:$0xff]
    %v2145 = vld [vmem:[%s2136 + $0x40] sm:$0xff]
    %v2146 = vld [vmem:[%s2136 + $0x48] sm:$0xff]
    %v2147 = vld [vmem:[%s2136 + $0x50] sm:$0xff]
    %v2148 = vld [vmem:[%s2136 + $0x58] sm:$0xff]
    %v2149 = vld [vmem:[%s2136 + $0x60] sm:$0xff]
    %v2150 = vld [vmem:[%s2136 + $0x68] sm:$0xff]
    %v2151 = vld [vmem:[%s2136 + $0x70] sm:$0xff]
    %v2152 = vld [vmem:[%s2136 + $0x78] sm:$0xff]
    %v2153 = vld [vmem:[%s2136 + $0x80] sm:$0xff]
    %v2154 = vld [vmem:[%s2136 + $0x88] sm:$0xff]
    %v2155 = vld [vmem:[%s2136 + $0x90] sm:$0xff]
    %v2156 = vld [vmem:[%s2136 + $0x98] sm:$0xff]
    %v2157 = vld [vmem:[%s2136 + $0xa0] sm:$0xff]
    %v2158 = vld [vmem:[%s2136 + $0xa8] sm:$0xff]
    %v2159 = vld [vmem:[%s2136 + $0xb0] sm:$0xff]
    %v2160 = vld [vmem:[%s2136 + $0xb8] sm:$0xff]
    %v2161 = vld [vmem:[%s2136 + $0xc0] sm:$0xff]
    %v2162 = vld [vmem:[%s2136 + $0xc8] sm:$0xff]
    %v2163 = vld [vmem:[%s2136 + $0xd0] sm:$0xff]
    %v2164 = vld [vmem:[%s2136 + $0xd8] sm:$0xff]
    %v2165 = vld [vmem:[%s2136 + $0xe0] sm:$0xff]
    %v2166 = vld [vmem:[%s2136 + $0xe8] sm:$0xff]
    %v2167 = vld [vmem:[%s2136 + $0xf0] sm:$0xff]
    %v2168 = vld [vmem:[%s2136 + $0xf8] sm:$0xff]
    %v2173 = vrot.slane %v1901, 7
    %v2174 = vsel %vm1941, %v2173, %v1897
    %v2175 = vrot.slane %v1902, 7
    %v2176 = vsel %vm1941, %v2175, %v1898
    %2179 = vmatprep.subr.mxu0 0.0
    %2180 = vmatpush1.msra.mxu0 %v2137
    %2181 = vmatprep.subr.mxu0 0.0
    %2182 = vmatpush1.msra.mxu0 %v2138
    %2183 = vmatprep.subr.mxu0 0.0
    %2184 = vmatpush1.msra.mxu0 %v2139
    %2185 = vmatprep.subr.mxu0 0.0
    %2186 = vmatpush1.msra.mxu0 %v2140
    %2187 = vmatprep.subr.mxu0 0.0
    %2188 = vmatpush1.msra.mxu0 %v2141
    %2189 = vmatprep.subr.mxu0 0.0
    %2190 = vmatpush1.msra.mxu0 %v2142
    %2191 = vmatprep.subr.mxu0 0.0
    %2192 = vmatpush1.msra.mxu0 %v2143
    %2193 = vmatprep.subr.mxu0 0.0
    %2194 = vmatpush1.msra.mxu0 %v2144
    %2195 = vmatprep.subr.mxu0 0.0
    %2196 = vmatpush1.msra.mxu0 %v2145
    %2197 = vmatprep.subr.mxu0 0.0
    %2198 = vmatpush1.msra.mxu0 %v2146
    %2199 = vmatprep.subr.mxu0 0.0
    %2200 = vmatpush1.msra.mxu0 %v2147
    %2201 = vmatprep.subr.mxu0 0.0
    %2202 = vmatpush1.msra.mxu0 %v2148
    %2203 = vmatprep.subr.mxu0 0.0
    %2204 = vmatpush1.msra.mxu0 %v2149
    %2205 = vmatprep.subr.mxu0 0.0
    %2206 = vmatpush1.msra.mxu0 %v2150
    %2207 = vmatprep.subr.mxu0 0.0
    %2208 = vmatpush1.msra.mxu0 %v2151
    %2209 = vmatprep.subr.mxu0 0.0
    %2210 = vmatpush1.msra.mxu0 %v2152
    %2211 = vmatprep.subr.mxu0 0.0
    %2212 = vmatpush1.msra.mxu0 %v2153
    %2213 = vmatprep.subr.mxu0 0.0
    %2214 = vmatpush1.msra.mxu0 %v2154
    %2215 = vmatprep.subr.mxu0 0.0
    %2216 = vmatpush1.msra.mxu0 %v2155
    %2217 = vmatprep.subr.mxu0 0.0
    %2218 = vmatpush1.msra.mxu0 %v2156
    %2219 = vmatprep.subr.mxu0 0.0
    %2220 = vmatpush1.msra.mxu0 %v2157
    %2221 = vmatprep.subr.mxu0 0.0
    %2222 = vmatpush1.msra.mxu0 %v2158
    %2223 = vmatprep.subr.mxu0 0.0
    %2224 = vmatpush1.msra.mxu0 %v2159
    %2225 = vmatprep.subr.mxu0 0.0
    %2226 = vmatpush1.msra.mxu0 %v2160
    %2227 = vmatprep.subr.mxu0 0.0
    %2228 = vmatpush1.msra.mxu0 %v2161
    %2229 = vmatprep.subr.mxu0 0.0
    %2230 = vmatpush1.msra.mxu0 %v2162
    %2231 = vmatprep.subr.mxu0 0.0
    %2232 = vmatpush1.msra.mxu0 %v2163
    %2233 = vmatprep.subr.mxu0 0.0
    %2234 = vmatpush1.msra.mxu0 %v2164
    %2235 = vmatprep.subr.mxu0 0.0
    %2236 = vmatpush1.msra.mxu0 %v2165
    %2237 = vmatprep.subr.mxu0 0.0
    %2238 = vmatpush1.msra.mxu0 %v2166
    %2239 = vmatprep.subr.mxu0 0.0
    %2240 = vmatpush1.msra.mxu0 %v2167
    %2241 = vmatprep.subr.mxu0 0.0
    %2242 = vmatpush1.msra.mxu0 %v2168
    %2243 = vmatprep.mubr.f32.mxu0 %v2176
    %2244 = vmatmul.mubr.f32.gmra.mrb[0].mxu0 %v2174
    %v2245 = vpop.f32.mrb[0].mxu0
    %v2246 = vadd.f32 0.0, %v2245
    %v2247 = vpop.f32.mrb[0].mxu0
    %2248 = vdwg.mxu0
    %v2249 = vadd.f32 %v2135, %v2246
    %s2250 = scalar_lea.vmem [#allocation10], 768
    %v2251 = vld [vmem:[%s2250] sm:$0xff]
    %v2252 = vld [vmem:[%s2250 + $0x8] sm:$0xff]
    %v2253 = vld [vmem:[%s2250 + $0x10] sm:$0xff]
    %v2254 = vld [vmem:[%s2250 + $0x18] sm:$0xff]
    %v2255 = vld [vmem:[%s2250 + $0x20] sm:$0xff]
    %v2256 = vld [vmem:[%s2250 + $0x28] sm:$0xff]
    %v2257 = vld [vmem:[%s2250 + $0x30] sm:$0xff]
    %v2258 = vld [vmem:[%s2250 + $0x38] sm:$0xff]
    %v2259 = vld [vmem:[%s2250 + $0x40] sm:$0xff]
    %v2260 = vld [vmem:[%s2250 + $0x48] sm:$0xff]
    %v2261 = vld [vmem:[%s2250 + $0x50] sm:$0xff]
    %v2262 = vld [vmem:[%s2250 + $0x58] sm:$0xff]
    %v2263 = vld [vmem:[%s2250 + $0x60] sm:$0xff]
    %v2264 = vld [vmem:[%s2250 + $0x68] sm:$0xff]
    %v2265 = vld [vmem:[%s2250 + $0x70] sm:$0xff]
    %v2266 = vld [vmem:[%s2250 + $0x78] sm:$0xff]
    %v2267 = vld [vmem:[%s2250 + $0x80] sm:$0xff]
    %v2268 = vld [vmem:[%s2250 + $0x88] sm:$0xff]
    %v2269 = vld [vmem:[%s2250 + $0x90] sm:$0xff]
    %v2270 = vld [vmem:[%s2250 + $0x98] sm:$0xff]
    %v2271 = vld [vmem:[%s2250 + $0xa0] sm:$0xff]
    %v2272 = vld [vmem:[%s2250 + $0xa8] sm:$0xff]
    %v2273 = vld [vmem:[%s2250 + $0xb0] sm:$0xff]
    %v2274 = vld [vmem:[%s2250 + $0xb8] sm:$0xff]
    %v2275 = vld [vmem:[%s2250 + $0xc0] sm:$0xff]
    %v2276 = vld [vmem:[%s2250 + $0xc8] sm:$0xff]
    %v2277 = vld [vmem:[%s2250 + $0xd0] sm:$0xff]
    %v2278 = vld [vmem:[%s2250 + $0xd8] sm:$0xff]
    %v2279 = vld [vmem:[%s2250 + $0xe0] sm:$0xff]
    %v2280 = vld [vmem:[%s2250 + $0xe8] sm:$0xff]
    %v2281 = vld [vmem:[%s2250 + $0xf0] sm:$0xff]
    %v2282 = vld [vmem:[%s2250 + $0xf8] sm:$0xff]
    %v2283 = vrot.slane %v1897, 4
    %v2284 = vrot.slane %v1901, 3
    %v2285 = vsel %vm1941, %v2284, %v2283
    %v2286 = vrot.slane %v1898, 4
    %v2287 = vrot.slane %v1902, 3
    %v2288 = vsel %vm1941, %v2287, %v2286
    %2291 = vmatprep.subr.mxu0 0.0
    %2292 = vmatpush1.msra.mxu0 %v2251
    %2293 = vmatprep.subr.mxu0 0.0
    %2294 = vmatpush1.msra.mxu0 %v2252
    %2295 = vmatprep.subr.mxu0 0.0
    %2296 = vmatpush1.msra.mxu0 %v2253
    %2297 = vmatprep.subr.mxu0 0.0
    %2298 = vmatpush1.msra.mxu0 %v2254
    %2299 = vmatprep.subr.mxu0 0.0
    %2300 = vmatpush1.msra.mxu0 %v2255
    %2301 = vmatprep.subr.mxu0 0.0
    %2302 = vmatpush1.msra.mxu0 %v2256
    %2303 = vmatprep.subr.mxu0 0.0
    %2304 = vmatpush1.msra.mxu0 %v2257
    %2305 = vmatprep.subr.mxu0 0.0
    %2306 = vmatpush1.msra.mxu0 %v2258
    %2307 = vmatprep.subr.mxu0 0.0
    %2308 = vmatpush1.msra.mxu0 %v2259
    %2309 = vmatprep.subr.mxu0 0.0
    %2310 = vmatpush1.msra.mxu0 %v2260
    %2311 = vmatprep.subr.mxu0 0.0
    %2312 = vmatpush1.msra.mxu0 %v2261
    %2313 = vmatprep.subr.mxu0 0.0
    %2314 = vmatpush1.msra.mxu0 %v2262
    %2315 = vmatprep.subr.mxu0 0.0
    %2316 = vmatpush1.msra.mxu0 %v2263
    %2317 = vmatprep.subr.mxu0 0.0
    %2318 = vmatpush1.msra.mxu0 %v2264
    %2319 = vmatprep.subr.mxu0 0.0
    %2320 = vmatpush1.msra.mxu0 %v2265
    %2321 = vmatprep.subr.mxu0 0.0
    %2322 = vmatpush1.msra.mxu0 %v2266
    %2323 = vmatprep.subr.mxu0 0.0
    %2324 = vmatpush1.msra.mxu0 %v2267
    %2325 = vmatprep.subr.mxu0 0.0
    %2326 = vmatpush1.msra.mxu0 %v2268
    %2327 = vmatprep.subr.mxu0 0.0
    %2328 = vmatpush1.msra.mxu0 %v2269
    %2329 = vmatprep.subr.mxu0 0.0
    %2330 = vmatpush1.msra.mxu0 %v2270
    %2331 = vmatprep.subr.mxu0 0.0
    %2332 = vmatpush1.msra.mxu0 %v2271
    %2333 = vmatprep.subr.mxu0 0.0
    %2334 = vmatpush1.msra.mxu0 %v2272
    %2335 = vmatprep.subr.mxu0 0.0
    %2336 = vmatpush1.msra.mxu0 %v2273
    %2337 = vmatprep.subr.mxu0 0.0
    %2338 = vmatpush1.msra.mxu0 %v2274
    %2339 = vmatprep.subr.mxu0 0.0
    %2340 = vmatpush1.msra.mxu0 %v2275
    %2341 = vmatprep.subr.mxu0 0.0
    %2342 = vmatpush1.msra.mxu0 %v2276
    %2343 = vmatprep.subr.mxu0 0.0
    %2344 = vmatpush1.msra.mxu0 %v2277
    %2345 = vmatprep.subr.mxu0 0.0
    %2346 = vmatpush1.msra.mxu0 %v2278
    %2347 = vmatprep.subr.mxu0 0.0
    %2348 = vmatpush1.msra.mxu0 %v2279
    %2349 = vmatprep.subr.mxu0 0.0
    %2350 = vmatpush1.msra.mxu0 %v2280
    %2351 = vmatprep.subr.mxu0 0.0
    %2352 = vmatpush1.msra.mxu0 %v2281
    %2353 = vmatprep.subr.mxu0 0.0
    %2354 = vmatpush1.msra.mxu0 %v2282
    %2355 = vmatprep.mubr.f32.mxu0 %v2288
    %2356 = vmatmul.mubr.f32.gmra.mrb[0].mxu0 %v2285
    %v2357 = vpop.f32.mrb[0].mxu0
    %v2358 = vadd.f32 0.0, %v2357
    %v2359 = vpop.f32.mrb[0].mxu0
    %2360 = vdwg.mxu0
    %v2361 = vadd.f32 %v2249, %v2358
    %v2362 = vmax.f32 %v2361, 0.0
    %v2363 = vld [vmem:[#allocation13] sm:$0xff]
    %v2364 = vld [vmem:[#allocation13 + $0x8] sm:$0xff]
    %v2365 = vld [vmem:[#allocation13 + $0x10] sm:$0xff]
    %v2366 = vld [vmem:[#allocation13 + $0x18] sm:$0xff]
    %v2367 = vld [vmem:[#allocation13 + $0x20] sm:$0xff]
    %v2368 = vld [vmem:[#allocation13 + $0x28] sm:$0xff]
    %v2369 = vld [vmem:[#allocation13 + $0x30] sm:$0xff]
    %v2370 = vld [vmem:[#allocation13 + $0x38] sm:$0xff]
    %v2371 = vld [vmem:[#allocation13 + $0x40] sm:$0xff]
    %v2372 = vld [vmem:[#allocation13 + $0x48] sm:$0xff]
    %v2373 = vld [vmem:[#allocation13 + $0x50] sm:$0xff]
    %v2374 = vld [vmem:[#allocation13 + $0x58] sm:$0xff]
    %v2375 = vld [vmem:[#allocation13 + $0x60] sm:$0xff]
    %v2376 = vld [vmem:[#allocation13 + $0x68] sm:$0xff]
    %v2377 = vld [vmem:[#allocation13 + $0x70] sm:$0xff]
    %v2378 = vld [vmem:[#allocation13 + $0x78] sm:$0xff]
    %v2379 = vld [vmem:[#allocation14] sm:$0x1]
    %v2381 = vlaneseq
    %v2382 = vshrl.u32 %v2381, 7
    %v2383 = vsub.s32 0, %v2382
    %v2384 = vrot.slane %v2379, %v2383
    %2386 = vmatprep.subr.mxu0 0.0
    %2387 = vmatpush1.msra.mxu0 %v2363
    %2388 = vmatprep.subr.mxu0 0.0
    %2389 = vmatpush1.msra.mxu0 %v2364
    %2390 = vmatprep.subr.mxu0 0.0
    %2391 = vmatpush1.msra.mxu0 %v2365
    %2392 = vmatprep.subr.mxu0 0.0
    %2393 = vmatpush1.msra.mxu0 %v2366
    %2394 = vmatprep.subr.mxu0 0.0
    %2395 = vmatpush1.msra.mxu0 %v2367
    %2396 = vmatprep.subr.mxu0 0.0
    %2397 = vmatpush1.msra.mxu0 %v2368
    %2398 = vmatprep.subr.mxu0 0.0
    %2399 = vmatpush1.msra.mxu0 %v2369
    %2400 = vmatprep.subr.mxu0 0.0
    %2401 = vmatpush1.msra.mxu0 %v2370
    %2402 = vmatprep.subr.mxu0 0.0
    %2403 = vmatpush1.msra.mxu0 %v2371
    %2404 = vmatprep.subr.mxu0 0.0
    %2405 = vmatpush1.msra.mxu0 %v2372
    %2406 = vmatprep.subr.mxu0 0.0
    %2407 = vmatpush1.msra.mxu0 %v2373
    %2408 = vmatprep.subr.mxu0 0.0
    %2409 = vmatpush1.msra.mxu0 %v2374
    %2410 = vmatprep.subr.mxu0 0.0
    %2411 = vmatpush1.msra.mxu0 %v2375
    %2412 = vmatprep.subr.mxu0 0.0
    %2413 = vmatpush1.msra.mxu0 %v2376
    %2414 = vmatprep.subr.mxu0 0.0
    %2415 = vmatpush1.msra.mxu0 %v2377
    %2416 = vmatprep.subr.mxu0 0.0
    %2417 = vmatpush1.msra.mxu0 %v2378
    %2418 = vmatprep.subr.mxu0 0.0
    %2419 = vmatpush1.msra.mxu0 0.0
    %2420 = vmatprep.subr.mxu0 0.0
    %2421 = vmatpush1.msra.mxu0 0.0
    %2422 = vmatprep.subr.mxu0 0.0
    %2423 = vmatpush1.msra.mxu0 0.0
    %2424 = vmatprep.subr.mxu0 0.0
    %2425 = vmatpush1.msra.mxu0 0.0
    %2426 = vmatprep.subr.mxu0 0.0
    %2427 = vmatpush1.msra.mxu0 0.0
    %2428 = vmatprep.subr.mxu0 0.0
    %2429 = vmatpush1.msra.mxu0 0.0
    %2430 = vmatprep.subr.mxu0 0.0
    %2431 = vmatpush1.msra.mxu0 0.0
    %2432 = vmatprep.subr.mxu0 0.0
    %2433 = vmatpush1.msra.mxu0 0.0
    %2434 = vmatprep.subr.mxu0 0.0
    %2435 = vmatpush1.msra.mxu0 0.0
    %2436 = vmatprep.subr.mxu0 0.0
    %2437 = vmatpush1.msra.mxu0 0.0
    %2438 = vmatprep.subr.mxu0 0.0
    %2439 = vmatpush1.msra.mxu0 0.0
    %2440 = vmatprep.subr.mxu0 0.0
    %2441 = vmatpush1.msra.mxu0 0.0
    %2442 = vmatprep.subr.mxu0 0.0
    %2443 = vmatpush1.msra.mxu0 0.0
    %2444 = vmatprep.subr.mxu0 0.0
    %2445 = vmatpush1.msra.mxu0 0.0
    %2446 = vmatprep.subr.mxu0 0.0
    %2447 = vmatpush1.msra.mxu0 0.0
    %2448 = vmatprep.subr.mxu0 0.0
    %2449 = vmatpush1.msra.mxu0 0.0
    %2450 = vmatprep.mubr.f32.mxu0 0.0
    %2451 = vmatmul.mubr.f32.gmra.mrb[0].mxu0 %v2362
    %v2452 = vpop.f32.mrb[0].mxu0
    %v2453 = vadd.f32 %v2384, %v2452
    %v2454 = vpop.f32.mrb[0].mxu0
    %2455 = vdwg.mxu0
    %v2456 = vsel %vm1000, %v2453, -inf
    %2457 = vmax.xlane.f32.xlu0 %v2456
    %v2458 = vpop.xlane.xlu0 %2457
    %v2459 = vsub.f32 %v2453, %v2458
    %v2460 = vmul.f32 %v2459, 1.442695
    %v2461 = vpow.pop %v2460
    %v2462 = vsel %vm1000, %v2461, 0.0
    %2463 = vadd.xlane.f32.xlu0 %v2462
    %v2464 = vpop.xlane.xlu0 %2463
    %v2465 = vlog2.pop %v2464
    %v2466 = vmul.f32 %v2465, 0.6931472
    %v2467 = vsub.f32 %v2459, %v2466
    %2468 = vst [vmem:[#allocation16] sm:$0x3] %v2467
    // Predicated region
    $region70: #{tpu_custom_call.1} parent=1 // pred_check
      _
    $region71: #{tpu_custom_call.1} parent=1 // pred_check_branch
      %2470 = sbr.rel (0) target = $region73
    $region72: #{tpu_custom_call.1} parent=1 // pred_region
      %s2472 = ssub.s32 32, 32
      %2473 = vsyncadd [#allocation4], %s2472
      %s2475 = sshll.u32 [#allocation16], 4
      %s2476 = int_to_ptr.vmem [resolvable:$true] %s2475
      %2478 = dma.vmem_to_hbm [thread:$0]  %s2476, 32, %s9, [#allocation4]
    $region73: #{tpu_custom_call.1} parent=1 // pred_fallthru
      _
    // Predicated region
    $region74: #{tpu_custom_call.1} parent=1 // pred_check
      _
    $region75: #{tpu_custom_call.1} parent=1 // pred_check_branch
      %2480 = sbr.rel (0) target = $region77
    $region76: #{tpu_custom_call.1} parent=1 // pred_region
      %2481 = dma.done [#allocation4], 32
    $region77: #{tpu_custom_call.1} parent=1 // pred_fallthru
      _
    %2482 = vsyncpa [#allocation3], 1
    %2483 = vsyncpa [#allocation6], 1
    %2484 = vsyncpa [#allocation9], 1
    %2485 = vsyncpa [#allocation12], 1
    %2486 = vsyncpa [#allocation15], 1
    %2487 = vsyncpa [#allocation4], 1

</llo_original>
